<compile_context>
chip_gen: v7x
topology: tpu7x:2x2x1
jax: 0.10.0
libtpu: 0.0.40
codegen_flags: <defaults>
</compile_context>

<pallas_src>
import jax
import jax.numpy as jnp
from jax.experimental import pallas as pl
from jax.experimental.pallas import tpu as pltpu


def _round_up(x, m):
    return ((x + m - 1) // m) * m


def _pad_axis(arr, axis, target):
    pad = target - arr.shape[axis]
    if pad <= 0:
        return arr
    widths = [(0, 0)] * arr.ndim
    widths[axis] = (0, pad)
    return jnp.pad(arr, widths)


def gcn0_kernel(a_ref, xt_ref, wc_ref, bc_ref, w0_ref, b0_ref, w1_ref, b1_ref,
                out_ref):
    # One grid step processes a tile of Bt graphs.
    a = a_ref[...]                      # (Bt, N, N) normalized adjacency
    xt = xt_ref[...]                    # (Bt, 1, N) node features, lane-dense

    # GraphConv with in_feats = 1: A_hat @ X is a per-node dot with a scalar
    # feature vector -> VPU broadcast-multiply + lane reduction (no MXU matmul
    # with a 1-lane result).
    ax = jnp.sum(a * xt, axis=-1, keepdims=True)        # (Bt, N, 1)

    # Apply the (1, 1000) conv weight as an outer product + bias + relu.
    h = jnp.maximum(ax * wc_ref[...] + bc_ref[...], 0.0)  # (Bt, N, 1000)

    # AvgPooling over nodes. (relu after the mean is a no-op since h >= 0.)
    pooled = jnp.mean(h, axis=1)                          # (Bt, 1000)

    # MLP tail, batched over the Bt graphs in this tile (M = Bt rows on MXU).
    h0 = jnp.maximum(
        jnp.dot(pooled, w0_ref[...], preferred_element_type=jnp.float32)
        + b0_ref[...], 0.0)                               # (Bt, 128)
    h1 = jnp.maximum(
        jnp.dot(h0, w1_ref[...], preferred_element_type=jnp.float32)
        + b1_ref[...], 0.0)                               # (Bt, Cp)

    out_ref[...] = h1


def gcn0_forward(a_hat, x, wc, bc, w0, b0, w1, b1, *, block_b=8):
    B, N, _ = a_hat.shape
    H_CONV = wc.shape[1]
    H_LIN = w0.shape[1]
    C = w1.shape[1]

    # Lane-pad the MLP tail to multiples of 128 so intermediate/output stores
    # are lane-dense (padded weight columns/rows are zero -> exact results).
    H_LIN_P = _round_up(H_LIN, 128)
    C_P = _round_up(C, 128)
    w0p = _pad_axis(w0, 1, H_LIN_P)
    b0p = _pad_axis(b0, 1, H_LIN_P)
    w1p = _pad_axis(_pad_axis(w1, 0, H_LIN_P), 1, C_P)
    b1p = _pad_axis(b1, 1, C_P)

    # Graph-batch tiling: keep the sublane dim of the (Bt, Cp) output block a
    # multiple of 8, pad the batch up to a whole number of tiles.
    block_b = max(8, _round_up(int(block_b), 8))
    B_pad = _round_up(B, block_b)
    a_p = _pad_axis(a_hat, 0, B_pad)
    xt_p = _pad_axis(jnp.transpose(x, (0, 2, 1)), 0, B_pad)   # (B_pad, 1, N)

    grid = (B_pad // block_b,)

    flops = int(
        B_pad * N * N * 2                 # a * x + lane reduce
        + B_pad * N * H_CONV * 4          # outer product, bias, relu, mean
        + B_pad * H_CONV * H_LIN_P * 2    # lin0 matmul
        + B_pad * H_LIN_P * C_P * 2       # lin1 matmul
    )
    bytes_accessed = int(4 * (
        B_pad * N * N + B_pad * N         # A_hat, X
        + 2 * H_CONV                      # Wc, bc
        + H_CONV * H_LIN_P + H_LIN_P      # W0, b0
        + H_LIN_P * C_P + C_P             # W1, b1
        + B_pad * C_P                     # output
    ))

    out = pl.pallas_call(
        gcn0_kernel,
        out_shape=jax.ShapeDtypeStruct((B_pad, C_P), jnp.float32),
        grid_spec=pltpu.PrefetchScalarGridSpec(
            num_scalar_prefetch=0,
            grid=grid,
            in_specs=[
                pl.BlockSpec((block_b, N, N), lambda i: (i, 0, 0)),   # A_hat
                pl.BlockSpec((block_b, 1, N), lambda i: (i, 0, 0)),   # X^T
                pl.BlockSpec((1, H_CONV), lambda i: (0, 0)),          # Wc
                pl.BlockSpec((1, H_CONV), lambda i: (0, 0)),          # bc
                pl.BlockSpec((H_CONV, H_LIN_P), lambda i: (0, 0)),    # W0 (padded)
                pl.BlockSpec((1, H_LIN_P), lambda i: (0, 0)),         # b0 (padded)
                pl.BlockSpec((H_LIN_P, C_P), lambda i: (0, 0)),       # W1 (padded)
                pl.BlockSpec((1, C_P), lambda i: (0, 0)),             # b1 (padded)
            ],
            out_specs=pl.BlockSpec((block_b, C_P), lambda i: (i, 0)),
        ),
        compiler_params=pltpu.CompilerParams(
            dimension_semantics=("parallel",),
            vmem_limit_bytes=32 * 1024 * 1024,
        ),
        cost_estimate=pl.CostEstimate(
            flops=flops, transcendentals=0, bytes_accessed=bytes_accessed),
    )(a_p, xt_p, wc, bc, w0p, b0p, w1p, b1p)

    return out[:B, :C]


def normalize_adjacency(adj):
    # DGL GraphConv norm='both': D^{-1/2} A D^{-1/2}, zero degrees clamped to 1.
    deg = jnp.sum(adj, axis=-1)                              # (B, N)
    deg = jnp.maximum(deg, 1.0)
    d_inv_sqrt = 1.0 / jnp.sqrt(deg)                         # (B, N)
    return adj * d_inv_sqrt[:, :, None] * d_inv_sqrt[:, None, :]


if __name__ == "__main__":
    B = 16             # number of graphs in the batch
    N = 16             # nodes per graph
    IN_FEAT = 1
    H_CONV = 1000
    H_LIN = 100
    NUM_CLASSES = 4
    BLOCK_B = 8        # graphs per grid step -> grid=(2,), both TCs busy on v7x

    key = jax.random.PRNGKey(0)
    k_adj, k_x, k_wc, k_bc, k_w0, k_b0, k_w1, k_b1 = jax.random.split(key, 8)

    # Random undirected graphs: symmetric binary adjacency, no self loops.
    upper = (jax.random.uniform(k_adj, (B, N, N)) < 0.3).astype(jnp.float32)
    upper = jnp.triu(upper, k=1)
    adj = upper + jnp.transpose(upper, (0, 2, 1))
    a_hat = normalize_adjacency(adj)

    x = jax.random.normal(k_x, (B, N, IN_FEAT), dtype=jnp.float32)

    # Deterministic synthetic parameters (shapes from GCN0.__init__).
    wc = jax.random.normal(k_wc, (IN_FEAT, H_CONV), dtype=jnp.float32) * 0.1
    bc = jax.random.normal(k_bc, (1, H_CONV), dtype=jnp.float32) * 0.01
    w0 = jax.random.normal(k_w0, (H_CONV, H_LIN), dtype=jnp.float32) * 0.03
    b0 = jax.random.normal(k_b0, (1, H_LIN), dtype=jnp.float32) * 0.01
    w1 = jax.random.normal(k_w1, (H_LIN, NUM_CLASSES), dtype=jnp.float32) * 0.1
    b1 = jax.random.normal(k_b1, (1, NUM_CLASSES), dtype=jnp.float32) * 0.01

    out = gcn0_forward(a_hat, x, wc, bc, w0, b0, w1, b1, block_b=BLOCK_B)
    out = jax.block_until_ready(out)

    # Pure-JAX reference check of the same math.
    ax_ref = jnp.einsum('bnm,bmi->bni', a_hat, x)            # (B, N, 1)
    h_ref = jnp.maximum(ax_ref @ wc + bc, 0.0)               # (B, N, 1000)
    p_ref = jnp.maximum(jnp.mean(h_ref, axis=1), 0.0)        # (B, 1000)
    h0_ref = jnp.maximum(p_ref @ w0 + b0, 0.0)               # (B, 100)
    ref = jnp.maximum(h0_ref @ w1 + b1, 0.0)                 # (B, C)

    assert out.shape == (B, NUM_CLASSES)
    assert jnp.allclose(out, ref, atol=1e-4, rtol=1e-4)

    print("KERNEL_OK")
</pallas_src>

<mosaic_0001>
module attributes {stable_mosaic.version = 11 : i64} {
  func.func @gcn0_kernel(%arg0: i32, %arg1: memref<8x16x16xf32, #tpu.memory_space<vmem>>, %arg2: memref<8x1x16xf32, #tpu.memory_space<vmem>>, %arg3: memref<1x1000xf32, #tpu.memory_space<vmem>>, %arg4: memref<1x1000xf32, #tpu.memory_space<vmem>>, %arg5: memref<1000x128xf32, #tpu.memory_space<vmem>>, %arg6: memref<1x128xf32, #tpu.memory_space<vmem>>, %arg7: memref<128x128xf32, #tpu.memory_space<vmem>>, %arg8: memref<1x128xf32, #tpu.memory_space<vmem>>, %arg9: memref<8x128xf32, #tpu.memory_space<vmem>>) attributes {dimension_semantics = [#tpu.dimension_semantics<parallel>], iteration_bounds = array<i64: 2>, scalar_prefetch = 0 : i64, scratch_operands = 0 : i64, tpu.core_type = #tpu.core_type<tc>, window_params = [{transform_indices = @transform_0, window_bounds = array<i64: 8, 16, 16>}, {transform_indices = @transform_1, window_bounds = array<i64: 8, 1, 16>}, {pipeline_mode = #tpu.pipeline_mode<synchronous>, transform_indices = @transform_2, window_bounds = array<i64: 1, 1000>}, {pipeline_mode = #tpu.pipeline_mode<synchronous>, transform_indices = @transform_3, window_bounds = array<i64: 1, 1000>}, {pipeline_mode = #tpu.pipeline_mode<synchronous>, transform_indices = @transform_4, window_bounds = array<i64: 1000, 128>}, {pipeline_mode = #tpu.pipeline_mode<synchronous>, transform_indices = @transform_5, window_bounds = array<i64: 1, 128>}, {pipeline_mode = #tpu.pipeline_mode<synchronous>, transform_indices = @transform_6, window_bounds = array<i64: 128, 128>}, {pipeline_mode = #tpu.pipeline_mode<synchronous>, transform_indices = @transform_7, window_bounds = array<i64: 1, 128>}, {transform_indices = @transform_8, window_bounds = array<i64: 8, 128>}]} {
    %c0 = arith.constant 0 : index
    %c0_0 = arith.constant 0 : index
    %c0_1 = arith.constant 0 : index
    %0 = vector.load %arg1[%c0, %c0_0, %c0_1] : memref<8x16x16xf32, #tpu.memory_space<vmem>>, vector<8x16x16xf32>
    %c0_2 = arith.constant 0 : index
    %c0_3 = arith.constant 0 : index
    %c0_4 = arith.constant 0 : index
    %1 = vector.load %arg2[%c0_2, %c0_3, %c0_4] : memref<8x1x16xf32, #tpu.memory_space<vmem>>, vector<8x1x16xf32>
    %2 = vector.broadcast %1 : vector<8x1x16xf32> to vector<8x16x16xf32>
    %3 = arith.mulf %0, %2 : vector<8x16x16xf32>
    %cst = arith.constant dense<0.000000e+00> : vector<8x16xf32>
    %4 = vector.multi_reduction <add>, %3, %cst [2] : vector<8x16x16xf32> to vector<8x16xf32>
    %5 = vector.shape_cast %4 : vector<8x16xf32> to vector<8x16x1xf32>
    %c0_5 = arith.constant 0 : index
    %c0_6 = arith.constant 0 : index
    %6 = vector.load %arg3[%c0_5, %c0_6] : memref<1x1000xf32, #tpu.memory_space<vmem>>, vector<1x1000xf32>
    %7 = vector.shape_cast %6 : vector<1x1000xf32> to vector<1x1x1000xf32>
    %8 = vector.broadcast %5 : vector<8x16x1xf32> to vector<8x16x1000xf32>
    %9 = vector.broadcast %7 : vector<1x1x1000xf32> to vector<8x16x1000xf32>
    %10 = arith.mulf %8, %9 : vector<8x16x1000xf32>
    %c0_7 = arith.constant 0 : index
    %c0_8 = arith.constant 0 : index
    %11 = vector.load %arg4[%c0_7, %c0_8] : memref<1x1000xf32, #tpu.memory_space<vmem>>, vector<1x1000xf32>
    %12 = vector.shape_cast %11 : vector<1x1000xf32> to vector<1x1x1000xf32>
    %13 = vector.broadcast %12 : vector<1x1x1000xf32> to vector<8x16x1000xf32>
    %14 = arith.addf %10, %13 : vector<8x16x1000xf32>
    %cst_9 = arith.constant 0.000000e+00 : f32
    %15 = vector.broadcast %cst_9 : f32 to vector<8x16x1000xf32>
    %16 = arith.maximumf %14, %15 : vector<8x16x1000xf32>
    %cst_10 = arith.constant dense<0.000000e+00> : vector<8x1000xf32>
    %17 = vector.multi_reduction <add>, %16, %cst_10 [1] : vector<8x16x1000xf32> to vector<8x1000xf32>
    %cst_11 = arith.constant 1.600000e+01 : f32
    %18 = vector.broadcast %cst_11 : f32 to vector<8x1000xf32>
    %19 = arith.divf %17, %18 : vector<8x1000xf32>
    %c0_12 = arith.constant 0 : index
    %c0_13 = arith.constant 0 : index
    %20 = vector.load %arg5[%c0_12, %c0_13] : memref<1000x128xf32, #tpu.memory_space<vmem>>, vector<1000x128xf32>
    %cst_14 = arith.constant dense<0.000000e+00> : vector<8x128xf32>
    %21 = tpu.matmul %19, %20, %cst_14 {dimension_numbers = #tpu.dot_dimension_numbers<[1], [0], [0], [1], [0, 0, 1, 1], [], []>} : vector<8x1000xf32>, vector<1000x128xf32>, vector<8x128xf32> -> vector<8x128xf32>
    %c0_15 = arith.constant 0 : index
    %c0_16 = arith.constant 0 : index
    %22 = vector.load %arg6[%c0_15, %c0_16] : memref<1x128xf32, #tpu.memory_space<vmem>>, vector<1x128xf32>
    %23 = vector.broadcast %22 : vector<1x128xf32> to vector<8x128xf32>
    %24 = arith.addf %21, %23 : vector<8x128xf32>
    %cst_17 = arith.constant 0.000000e+00 : f32
    %25 = vector.broadcast %cst_17 : f32 to vector<8x128xf32>
    %26 = arith.maximumf %24, %25 : vector<8x128xf32>
    %c0_18 = arith.constant 0 : index
    %c0_19 = arith.constant 0 : index
    %27 = vector.load %arg7[%c0_18, %c0_19] : memref<128x128xf32, #tpu.memory_space<vmem>>, vector<128x128xf32>
    %cst_20 = arith.constant dense<0.000000e+00> : vector<8x128xf32>
    %28 = tpu.matmul %26, %27, %cst_20 {dimension_numbers = #tpu.dot_dimension_numbers<[1], [0], [0], [1], [0, 0, 1, 1], [], []>} : vector<8x128xf32>, vector<128x128xf32>, vector<8x128xf32> -> vector<8x128xf32>
    %c0_21 = arith.constant 0 : index
    %c0_22 = arith.constant 0 : index
    %29 = vector.load %arg8[%c0_21, %c0_22] : memref<1x128xf32, #tpu.memory_space<vmem>>, vector<1x128xf32>
    %30 = vector.broadcast %29 : vector<1x128xf32> to vector<8x128xf32>
    %31 = arith.addf %28, %30 : vector<8x128xf32>
    %cst_23 = arith.constant 0.000000e+00 : f32
    %32 = vector.broadcast %cst_23 : f32 to vector<8x128xf32>
    %33 = arith.maximumf %31, %32 : vector<8x128xf32>
    %c0_24 = arith.constant 0 : index
    %c0_25 = arith.constant 0 : index
    %34 = vector.load %arg9[%c0_24, %c0_25] : memref<8x128xf32, #tpu.memory_space<vmem>>, vector<8x128xf32>
    tpu.vector_store %arg9[%c0_24, %c0_25], %33 {strides = array<i32>} : memref<8x128xf32, #tpu.memory_space<vmem>>, vector<8x128xf32>,
    return
  }
  func.func @transform_0(%arg0: i32) -> (i32, i32, i32) {
    %c0_i32 = arith.constant 0 : i32
    %c0_i32_0 = arith.constant 0 : i32
    %c0_i32_1 = arith.constant 0 : i32
    return %arg0, %c0_i32, %c0_i32_0 : i32, i32, i32
  }
  func.func @transform_1(%arg0: i32) -> (i32, i32, i32) {
    %c0_i32 = arith.constant 0 : i32
    %c0_i32_0 = arith.constant 0 : i32
    %c0_i32_1 = arith.constant 0 : i32
    return %arg0, %c0_i32, %c0_i32_0 : i32, i32, i32
  }
  func.func @transform_2(%arg0: i32) -> (i32, i32) {
    %c0_i32 = arith.constant 0 : i32
    %c0_i32_0 = arith.constant 0 : i32
    %c0_i32_1 = arith.constant 0 : i32
    return %c0_i32, %c0_i32_0 : i32, i32
  }
  func.func @transform_3(%arg0: i32) -> (i32, i32) {
    %c0_i32 = arith.constant 0 : i32
    %c0_i32_0 = arith.constant 0 : i32
    %c0_i32_1 = arith.constant 0 : i32
    return %c0_i32, %c0_i32_0 : i32, i32
  }
  func.func @transform_4(%arg0: i32) -> (i32, i32) {
    %c0_i32 = arith.constant 0 : i32
    %c0_i32_0 = arith.constant 0 : i32
    %c0_i32_1 = arith.constant 0 : i32
    return %c0_i32, %c0_i32_0 : i32, i32
  }
  func.func @transform_5(%arg0: i32) -> (i32, i32) {
    %c0_i32 = arith.constant 0 : i32
    %c0_i32_0 = arith.constant 0 : i32
    %c0_i32_1 = arith.constant 0 : i32
    return %c0_i32, %c0_i32_0 : i32, i32
  }
  func.func @transform_6(%arg0: i32) -> (i32, i32) {
    %c0_i32 = arith.constant 0 : i32
    %c0_i32_0 = arith.constant 0 : i32
    %c0_i32_1 = arith.constant 0 : i32
    return %c0_i32, %c0_i32_0 : i32, i32
  }
  func.func @transform_7(%arg0: i32) -> (i32, i32) {
    %c0_i32 = arith.constant 0 : i32
    %c0_i32_0 = arith.constant 0 : i32
    %c0_i32_1 = arith.constant 0 : i32
    return %c0_i32, %c0_i32_0 : i32, i32
  }
  func.func @transform_8(%arg0: i32) -> (i32, i32) {
    %c0_i32 = arith.constant 0 : i32
    %c0_i32_0 = arith.constant 0 : i32
    return %arg0, %c0_i32 : i32, i32
  }
}

</mosaic_0001>

<llo_original>
// kernel: tpu_custom_call.1
$region0: #{tpu_custom_call.1}
  #allocation0 [shape = 'u32[]', space=smem, size = 0x4, offset = 0x4, fixed_abs, tag = 'smem constant byte address 0x4 - core index']
  #allocation1 [shape = 'u32[144,128]{1,0:T(1,128)}', space=vmem, size = 0x12000, scoped, tag = 'internal scratch']
  %s0 = inlined_call_operand.hbm [shape: f32[16,16,16], index: 0, kind: input, shape index: {}]
  %s1 = inlined_call_operand.hbm [shape: f32[16,1,16], index: 1, kind: input, shape index: {}]
  %s2 = inlined_call_operand.hbm [shape: f32[1,1000], index: 2, kind: input, shape index: {}]
  %s3 = inlined_call_operand.vmem [shape: f32[1,1000], index: 3, kind: input, shape index: {}]
  %s4 = inlined_call_operand.hbm [shape: f32[1000,128], index: 4, kind: input, shape index: {}]
  %s5 = inlined_call_operand.vmem [shape: f32[1,128], index: 5, kind: input, shape index: {}]
  %s6 = inlined_call_operand.hbm [shape: f32[128,128], index: 6, kind: input, shape index: {}]
  %s7 = inlined_call_operand.vmem [shape: f32[1,128], index: 7, kind: input, shape index: {}]
  %s8 = inlined_call_operand.hbm [shape: f32[16,128], index: 8, kind: output, shape index: {}]
  %s9 = sld [smem:[#allocation0]]
  $region85: #{tpu_custom_call.1} parent=0
    _
  %s11 = ssub.s32 1, %s9
  %s12 = scalar_select 0, %s11, %s9
  $region1: #{tpu_custom_call.1} parent=0
    #allocation2 [shape = 'u8[131072]{0}', space=vmem, size = 0x20000, scoped, tag = 'input window, operand 0']
    #allocation3 [shape = 's32[2]{0}', space=sflag, size = 0x8, scoped, tag = 'scoped memory for tpu_custom_call.1']
    #allocation4 [shape = 's32[2]{0}', space=sflag, size = 0x8, scoped, tag = 'scoped memory for tpu_custom_call.1']
    #allocation5 [shape = 'u8[8192]{0}', space=vmem, size = 0x2000, scoped, tag = 'input window, operand 1']
    #allocation6 [shape = 's32[2]{0}', space=sflag, size = 0x8, scoped, tag = 'scoped memory for tpu_custom_call.1']
    #allocation7 [shape = 'u8[4096]{0}', space=vmem, size = 0x1000, scoped, tag = 'input window, operand 2, single buffered']
    #allocation8 [shape = 'u8[512000]{0}', space=vmem, size = 0x7d000, scoped, tag = 'input window, operand 4, single buffered']
    #allocation9 [shape = 's32[1]{0}', space=sflag, size = 0x4, scoped, tag = 'scoped memory for tpu_custom_call.1']
    #allocation10 [shape = 'u8[65536]{0}', space=vmem, size = 0x10000, scoped, tag = 'input window, operand 6, single buffered']
    #allocation11 [shape = 'u8[8192]{0}', space=vmem, size = 0x2000, scoped, tag = 'output window, operand 0']
    %13 = vsyncpa [#allocation3], 0
    %s14 = scalar_lea.sflag [#allocation3], 1
    %15 = vsyncpa %s14, 0
    %16 = vsyncpa [#allocation6], 0
    %s17 = scalar_lea.sflag [#allocation6], 1
    %18 = vsyncpa %s17, 0
    %19 = vsyncpa [#allocation9], 0
    %20 = vsyncpa [#allocation4], 0
    %s21 = scalar_lea.sflag [#allocation4], 1
    %22 = vsyncpa %s21, 0
    loop: start=0, step=1, limit=4
    $region2: #{tpu_custom_call.1} parent=1 // loop_pre_header
      _
    $region3: #{tpu_custom_call.1} parent=1 // loop_header
      %s24 = sphi 0, %s28
      %p25 = scmp.ge.s32.totalorder %s24, 4
      %s34 = sphi 0, %s36
      %s37 = sphi 0, %s34
      %s38 = sphi 0, %s37
      %s54 = sphi 0, %s38
      %s60 = sphi 0, %s62
      %s63 = sphi 0, %s60
      %s64 = sphi 0, %s63
      %s80 = sphi 0, %s64
      %s84 = sphi 0, %s84
      %s86 = sphi 0, %s84
      %s87 = sphi 0, %s86
      %s101 = sphi 0, %s87
      %s105 = sphi 0, %s105
      %s107 = sphi 0, %s105
      %s108 = sphi 0, %s107
      %s122 = sphi 0, %s108
      %s126 = sphi 0, %s126
      %s128 = sphi 0, %s126
      %s129 = sphi 0, %s128
      %s143 = sphi 0, %s129
      %s147 = sphi 0, %s147
      %s149 = sphi 0, %s147
      %s150 = sphi 0, %s149
      %s164 = sphi 0, %s150
      %s168 = sphi 0, %s168
      %s170 = sphi 0, %s168
      %s171 = sphi 0, %s170
      %s185 = sphi 0, %s171
      %s189 = sphi 0, %s189
      %s191 = sphi 0, %s189
      %s192 = sphi 0, %s191
      %s206 = sphi 0, %s192
      %s212 = sphi 0, %s214
      %s215 = sphi 0, %s212
      %s216 = sphi 0, %s215
      %s232 = sphi 0, %s216
    $region4: #{tpu_custom_call.1} parent=1 // loop_header_branch
      %27 = sbr.rel (%p25) target = $region8
    $region5: #{tpu_custom_call.1} parent=1 // loop_body
      %s29 = ssub.s32 %s24, 1
      %s30 = ssub.s32 %s24, 2
      %s31 = sadd.s32 %s24, 1
      %s32 = ssub.s32 %s24, %s31
      %p33 = scmp.eq.s32.totalorder %s32, 0
      %s35 = sadd.s32 %s34, 1
      %s36 = scalar_select %p33, %s34, %s35
      %p39 = pneg %p33
      %p40 = scmp.eq.s32.totalorder %s24, 1
      %p41 = por %p39, %p40
      %p42 = scmp.ne.s32.totalorder %s34, %s37
      %p43 = scmp.eq.s32.totalorder %s24, 0
      %p44 = por %p42, %p43
      %p45 = scmp.ne.s32.totalorder %s34, %s37
      %p46 = scmp.eq.s32.totalorder %s29, 1
      %p47 = por %p45, %p46
      %p48 = scmp.ne.s32.totalorder %s37, %s38
      %p49 = scmp.eq.s32.totalorder %s29, 0
      %p50 = por %p48, %p49
      %p51 = scmp.ne.s32.totalorder %s37, %s38
      %p52 = scmp.eq.s32.totalorder %s30, 1
      %p53 = por %p51, %p52
      %p55 = scmp.ne.s32.totalorder %s38, %s54
      %p56 = scmp.eq.s32.totalorder %s30, 0
      %p57 = por %p55, %p56
      %s58 = ssub.s32 %s24, %s31
      %p59 = scmp.eq.s32.totalorder %s58, 0
      %s61 = sadd.s32 %s60, 1
      %s62 = scalar_select %p59, %s60, %s61
      %p65 = pneg %p59
      %p66 = scmp.eq.s32.totalorder %s24, 1
      %p67 = por %p65, %p66
      %p68 = scmp.ne.s32.totalorder %s60, %s63
      %p69 = scmp.eq.s32.totalorder %s24, 0
      %p70 = por %p68, %p69
      %p71 = scmp.ne.s32.totalorder %s60, %s63
      %p72 = scmp.eq.s32.totalorder %s29, 1
      %p73 = por %p71, %p72
      %p74 = scmp.ne.s32.totalorder %s63, %s64
      %p75 = scmp.eq.s32.totalorder %s29, 0
      %p76 = por %p74, %p75
      %p77 = scmp.ne.s32.totalorder %s63, %s64
      %p78 = scmp.eq.s32.totalorder %s30, 1
      %p79 = por %p77, %p78
      %p81 = scmp.ne.s32.totalorder %s64, %s80
      %p82 = scmp.eq.s32.totalorder %s30, 0
      %p83 = por %p81, %p82
      %s85 = sadd.s32 %s84, 1
      %p88 = scmp.eq.s32.totalorder %s24, 1
      %p89 = scmp.ne.s32.totalorder %s84, %s86
      %p90 = scmp.eq.s32.totalorder %s24, 0
      %p91 = por %p89, %p90
      %p92 = scmp.ne.s32.totalorder %s84, %s86
      %p93 = scmp.eq.s32.totalorder %s29, 1
      %p94 = por %p92, %p93
      %p95 = scmp.ne.s32.totalorder %s86, %s87
      %p96 = scmp.eq.s32.totalorder %s29, 0
      %p97 = por %p95, %p96
      %p98 = scmp.ne.s32.totalorder %s86, %s87
      %p99 = scmp.eq.s32.totalorder %s30, 1
      %p100 = por %p98, %p99
      %p102 = scmp.ne.s32.totalorder %s87, %s101
      %p103 = scmp.eq.s32.totalorder %s30, 0
      %p104 = por %p102, %p103
      %s106 = sadd.s32 %s105, 1
      %p109 = scmp.eq.s32.totalorder %s24, 1
      %p110 = scmp.ne.s32.totalorder %s105, %s107
      %p111 = scmp.eq.s32.totalorder %s24, 0
      %p112 = por %p110, %p111
      %p113 = scmp.ne.s32.totalorder %s105, %s107
      %p114 = scmp.eq.s32.totalorder %s29, 1
      %p115 = por %p113, %p114
      %p116 = scmp.ne.s32.totalorder %s107, %s108
      %p117 = scmp.eq.s32.totalorder %s29, 0
      %p118 = por %p116, %p117
      %p119 = scmp.ne.s32.totalorder %s107, %s108
      %p120 = scmp.eq.s32.totalorder %s30, 1
      %p121 = por %p119, %p120
      %p123 = scmp.ne.s32.totalorder %s108, %s122
      %p124 = scmp.eq.s32.totalorder %s30, 0
      %p125 = por %p123, %p124
      %s127 = sadd.s32 %s126, 1
      %p130 = scmp.eq.s32.totalorder %s24, 1
      %p131 = scmp.ne.s32.totalorder %s126, %s128
      %p132 = scmp.eq.s32.totalorder %s24, 0
      %p133 = por %p131, %p132
      %p134 = scmp.ne.s32.totalorder %s126, %s128
      %p135 = scmp.eq.s32.totalorder %s29, 1
      %p136 = por %p134, %p135
      %p137 = scmp.ne.s32.totalorder %s128, %s129
      %p138 = scmp.eq.s32.totalorder %s29, 0
      %p139 = por %p137, %p138
      %p140 = scmp.ne.s32.totalorder %s128, %s129
      %p141 = scmp.eq.s32.totalorder %s30, 1
      %p142 = por %p140, %p141
      %p144 = scmp.ne.s32.totalorder %s129, %s143
      %p145 = scmp.eq.s32.totalorder %s30, 0
      %p146 = por %p144, %p145
      %s148 = sadd.s32 %s147, 1
      %p151 = scmp.eq.s32.totalorder %s24, 1
      %p152 = scmp.ne.s32.totalorder %s147, %s149
      %p153 = scmp.eq.s32.totalorder %s24, 0
      %p154 = por %p152, %p153
      %p155 = scmp.ne.s32.totalorder %s147, %s149
      %p156 = scmp.eq.s32.totalorder %s29, 1
      %p157 = por %p155, %p156
      %p158 = scmp.ne.s32.totalorder %s149, %s150
      %p159 = scmp.eq.s32.totalorder %s29, 0
      %p160 = por %p158, %p159
      %p161 = scmp.ne.s32.totalorder %s149, %s150
      %p162 = scmp.eq.s32.totalorder %s30, 1
      %p163 = por %p161, %p162
      %p165 = scmp.ne.s32.totalorder %s150, %s164
      %p166 = scmp.eq.s32.totalorder %s30, 0
      %p167 = por %p165, %p166
      %s169 = sadd.s32 %s168, 1
      %p172 = scmp.eq.s32.totalorder %s24, 1
      %p173 = scmp.ne.s32.totalorder %s168, %s170
      %p174 = scmp.eq.s32.totalorder %s24, 0
      %p175 = por %p173, %p174
      %p176 = scmp.ne.s32.totalorder %s168, %s170
      %p177 = scmp.eq.s32.totalorder %s29, 1
      %p178 = por %p176, %p177
      %p179 = scmp.ne.s32.totalorder %s170, %s171
      %p180 = scmp.eq.s32.totalorder %s29, 0
      %p181 = por %p179, %p180
      %p182 = scmp.ne.s32.totalorder %s170, %s171
      %p183 = scmp.eq.s32.totalorder %s30, 1
      %p184 = por %p182, %p183
      %p186 = scmp.ne.s32.totalorder %s171, %s185
      %p187 = scmp.eq.s32.totalorder %s30, 0
      %p188 = por %p186, %p187
      %s190 = sadd.s32 %s189, 1
      %p193 = scmp.eq.s32.totalorder %s24, 1
      %p194 = scmp.ne.s32.totalorder %s189, %s191
      %p195 = scmp.eq.s32.totalorder %s24, 0
      %p196 = por %p194, %p195
      %p197 = scmp.ne.s32.totalorder %s189, %s191
      %p198 = scmp.eq.s32.totalorder %s29, 1
      %p199 = por %p197, %p198
      %p200 = scmp.ne.s32.totalorder %s191, %s192
      %p201 = scmp.eq.s32.totalorder %s29, 0
      %p202 = por %p200, %p201
      %p203 = scmp.ne.s32.totalorder %s191, %s192
      %p204 = scmp.eq.s32.totalorder %s30, 1
      %p205 = por %p203, %p204
      %p207 = scmp.ne.s32.totalorder %s192, %s206
      %p208 = scmp.eq.s32.totalorder %s30, 0
      %p209 = por %p207, %p208
      %s210 = ssub.s32 %s24, %s31
      %p211 = scmp.eq.s32.totalorder %s210, 0
      %s213 = sadd.s32 %s212, 1
      %s214 = scalar_select %p211, %s212, %s213
      %p217 = pneg %p211
      %p218 = scmp.eq.s32.totalorder %s24, 1
      %p219 = por %p217, %p218
      %p220 = scmp.ne.s32.totalorder %s212, %s215
      %p221 = scmp.eq.s32.totalorder %s24, 0
      %p222 = por %p220, %p221
      %p223 = scmp.ne.s32.totalorder %s212, %s215
      %p224 = scmp.eq.s32.totalorder %s29, 1
      %p225 = por %p223, %p224
      %p226 = scmp.ne.s32.totalorder %s215, %s216
      %p227 = scmp.eq.s32.totalorder %s29, 0
      %p228 = por %p226, %p227
      %p229 = scmp.ne.s32.totalorder %s215, %s216
      %p230 = scmp.eq.s32.totalorder %s30, 1
      %p231 = por %p229, %p230
      %p233 = scmp.ne.s32.totalorder %s216, %s232
      %p234 = scmp.eq.s32.totalorder %s30, 0
      %p235 = por %p233, %p234
      %p236 = scmp.le.s32.totalorder 1, %s24
      %p237 = scmp.lt.s32.totalorder %s24, 3
      %p238 = pnand %p236, %p237
      %p239 = pneg %p238
      // Predicated region
      $region9: #{tpu_custom_call.1} parent=5 // pred_check
        _
      $region10: #{tpu_custom_call.1} parent=5 // pred_check_branch
        %241 = sbr.rel (%p238) target = $region12
      $region11: #{tpu_custom_call.1} parent=5 // pred_region
        %s242 = ssub.s32 %s24, 1
        // Predicated region
        $region13: #{tpu_custom_call.1} parent=11 // pred_check
          %p243 = pneg %p97
        $region14: #{tpu_custom_call.1} parent=11 // pred_check_branch
          %245 = sbr.rel (%p243) target = $region16
        $region15: #{tpu_custom_call.1} parent=11 // pred_region
          %s247 = ssub.s32 128, 128
          %248 = vsyncadd [#allocation6], %s247
          %s250 = sshll.u32 [#allocation7], 4
          %s251 = int_to_ptr.vmem [resolvable:$true] %s250
          %253 = dma.hbm_to_vmem [thread:$0]  %s2, 128, %s251, [#allocation6]
        $region16: #{tpu_custom_call.1} parent=11 // pred_fallthru
          _
        // Predicated region
        $region17: #{tpu_custom_call.1} parent=11 // pred_check
          %p254 = pneg %p118
        $region18: #{tpu_custom_call.1} parent=11 // pred_check_branch
          %256 = sbr.rel (%p254) target = $region20
        $region19: #{tpu_custom_call.1} parent=11 // pred_region
          _
        $region20: #{tpu_custom_call.1} parent=11 // pred_fallthru
          _
        // Predicated region
        $region21: #{tpu_custom_call.1} parent=11 // pred_check
          %p257 = pneg %p139
        $region22: #{tpu_custom_call.1} parent=11 // pred_check_branch
          %259 = sbr.rel (%p257) target = $region24
        $region23: #{tpu_custom_call.1} parent=11 // pred_region
          %s261 = ssub.s32 16000, 16000
          %262 = vsyncadd [#allocation9], %s261
          %s263 = sshll.u32 [#allocation8], 4
          %s264 = int_to_ptr.vmem [resolvable:$true] %s263
          %269 = dma.hbm_to_vmem [thread:$0]  %s4, 16000, %s264, [#allocation9], 128, 128, 8
        $region24: #{tpu_custom_call.1} parent=11 // pred_fallthru
          _
        // Predicated region
        $region25: #{tpu_custom_call.1} parent=11 // pred_check
          %p270 = pneg %p160
        $region26: #{tpu_custom_call.1} parent=11 // pred_check_branch
          %272 = sbr.rel (%p270) target = $region28
        $region27: #{tpu_custom_call.1} parent=11 // pred_region
          _
        $region28: #{tpu_custom_call.1} parent=11 // pred_fallthru
          _
        // Predicated region
        $region29: #{tpu_custom_call.1} parent=11 // pred_check
          %p273 = pneg %p181
        $region30: #{tpu_custom_call.1} parent=11 // pred_check_branch
          %275 = sbr.rel (%p273) target = $region32
        $region31: #{tpu_custom_call.1} parent=11 // pred_region
          %s277 = ssub.s32 2048, 2048
          %278 = vsyncadd [#allocation9], %s277
          %s279 = sshll.u32 [#allocation10], 4
          %s280 = int_to_ptr.vmem [resolvable:$true] %s279
          %285 = dma.hbm_to_vmem [thread:$0]  %s6, 2048, %s280, [#allocation9], 128, 128, 8
        $region32: #{tpu_custom_call.1} parent=11 // pred_fallthru
          _
        // Predicated region
        $region33: #{tpu_custom_call.1} parent=11 // pred_check
          %p286 = pneg %p202
        $region34: #{tpu_custom_call.1} parent=11 // pred_check_branch
          %288 = sbr.rel (%p286) target = $region36
        $region35: #{tpu_custom_call.1} parent=11 // pred_region
          _
        $region36: #{tpu_custom_call.1} parent=11 // pred_fallthru
          _
      $region12: #{tpu_custom_call.1} parent=5 // pred_fallthru
        _
      %p289 = scmp.lt.s32.totalorder %s24, 2
      // Predicated region
      $region37: #{tpu_custom_call.1} parent=5 // pred_check
        %p290 = pneg %p289
      $region38: #{tpu_custom_call.1} parent=5 // pred_check_branch
        %292 = sbr.rel (%p290) target = $region40
      $region39: #{tpu_custom_call.1} parent=5 // pred_region
        // Predicated region
        $region41: #{tpu_custom_call.1} parent=39 // pred_check
          %p293 = pneg %p44
        $region42: #{tpu_custom_call.1} parent=39 // pred_check_branch
          %295 = sbr.rel (%p293) target = $region44
        $region43: #{tpu_custom_call.1} parent=39 // pred_region
          %s296 = sand.u32 %s34, 1
          %s297 = scalar_lea.sflag [#allocation3], %s296
          %s298 = sand.u32 %s34, 1
          %s299 = smul.addr %s298, 128
          %s300 = scalar_lea.vmem [#allocation2], %s299
          %s301 = smul.u32 8, %s24
          %s303 = ssub.s32 2048, 2048
          %304 = vsyncadd %s297, %s303
          %s305 = smul.addr %s301, 2
          %s306 = smul.addr %s305, 128
          %s307 = scalar_lea.hbm %s0, %s306
          %s308 = sshll.u32 %s300, 4
          %s309 = int_to_ptr.vmem [resolvable:$true] %s308
          %314 = dma.hbm_to_vmem [thread:$0]  %s307, 2048, %s309, %s297, 128, 128, 8
        $region44: #{tpu_custom_call.1} parent=39 // pred_fallthru
          _
        // Predicated region
        $region45: #{tpu_custom_call.1} parent=39 // pred_check
          %p315 = pneg %p70
        $region46: #{tpu_custom_call.1} parent=39 // pred_check_branch
          %317 = sbr.rel (%p315) target = $region48
        $region47: #{tpu_custom_call.1} parent=39 // pred_region
          %s318 = sand.u32 %s24, 1
          %s319 = scalar_lea.sflag [#allocation6], %s318
          %s320 = sand.u32 %s60, 1
          %s321 = smul.addr %s320, 8
          %s322 = scalar_lea.vmem [#allocation5], %s321
          %s323 = smul.u32 8, %s24
          %s325 = ssub.s32 128, 128
          %326 = vsyncadd %s319, %s325
          %s327 = smul.addr %s323, 16
          %s328 = scalar_lea.hbm %s1, %s327
          %s329 = sshll.u32 %s322, 4
          %s330 = int_to_ptr.vmem [resolvable:$true] %s329
          %335 = dma.hbm_to_vmem [thread:$0]  %s328, 128, %s330, %s319, 16, 16, 1
        $region48: #{tpu_custom_call.1} parent=39 // pred_fallthru
          _
      $region40: #{tpu_custom_call.1} parent=5 // pred_fallthru
        _
      %p336 = scmp.le.s32.totalorder 1, %s24
      %p337 = scmp.lt.s32.totalorder %s24, 3
      %p338 = pnand %p336, %p337
      %p339 = pneg %p338
      // Predicated region
      $region49: #{tpu_custom_call.1} parent=5 // pred_check
        _
      $region50: #{tpu_custom_call.1} parent=5 // pred_check_branch
        %341 = sbr.rel (%p338) target = $region52
      $region51: #{tpu_custom_call.1} parent=5 // pred_region
        %s342 = ssub.s32 %s24, 1
        %s343 = sand.u32 %s37, 1
        %s344 = scalar_lea.sflag [#allocation3], %s343
        %s345 = sand.u32 %s37, 1
        %s346 = smul.addr %s345, 128
        %s347 = scalar_lea.vmem [#allocation2], %s346
        // Predicated region
        $region53: #{tpu_custom_call.1} parent=51 // pred_check
          %p348 = pneg %p50
        $region54: #{tpu_custom_call.1} parent=51 // pred_check_branch
          %350 = sbr.rel (%p348) target = $region56
        $region55: #{tpu_custom_call.1} parent=51 // pred_region
          %351 = dma.done %s344, 2048
        $region56: #{tpu_custom_call.1} parent=51 // pred_fallthru
          _
        %s352 = sand.u32 %s29, 1
        %s353 = scalar_lea.sflag [#allocation6], %s352
        %s354 = sand.u32 %s63, 1
        %s355 = smul.addr %s354, 8
        %s356 = scalar_lea.vmem [#allocation5], %s355
        // Predicated region
        $region57: #{tpu_custom_call.1} parent=51 // pred_check
          %p357 = pneg %p76
        $region58: #{tpu_custom_call.1} parent=51 // pred_check_branch
          %359 = sbr.rel (%p357) target = $region60
        $region59: #{tpu_custom_call.1} parent=51 // pred_region
          %360 = dma.done %s353, 128
        $region60: #{tpu_custom_call.1} parent=51 // pred_fallthru
          _
        // Predicated region
        $region61: #{tpu_custom_call.1} parent=51 // pred_check
          %p361 = pneg %p97
        $region62: #{tpu_custom_call.1} parent=51 // pred_check_branch
          %363 = sbr.rel (%p361) target = $region64
        $region63: #{tpu_custom_call.1} parent=51 // pred_region
          %364 = dma.done [#allocation6], 128
        $region64: #{tpu_custom_call.1} parent=51 // pred_fallthru
          _
        // Predicated region
        $region65: #{tpu_custom_call.1} parent=51 // pred_check
          %p365 = pneg %p139
        $region66: #{tpu_custom_call.1} parent=51 // pred_check_branch
          %367 = sbr.rel (%p365) target = $region68
        $region67: #{tpu_custom_call.1} parent=51 // pred_region
          %368 = dma.done [#allocation9], 16000
        $region68: #{tpu_custom_call.1} parent=51 // pred_fallthru
          _
        // Predicated region
        $region69: #{tpu_custom_call.1} parent=51 // pred_check
          %p369 = pneg %p181
        $region70: #{tpu_custom_call.1} parent=51 // pred_check_branch
          %371 = sbr.rel (%p369) target = $region72
        $region71: #{tpu_custom_call.1} parent=51 // pred_region
          %372 = dma.done [#allocation9], 2048
        $region72: #{tpu_custom_call.1} parent=51 // pred_fallthru
          _
        %s373 = sand.u32 %s37, 1
        %s374 = scalar_lea.sflag [#allocation3], %s373
        %s375 = sand.u32 %s37, 1
        %s376 = smul.addr %s375, 128
        %s377 = scalar_lea.vmem [#allocation2], %s376
        %p378 = pneg %p50
        %p379 = pneg %p47
        %s380 = sand.u32 %s29, 1
        %s381 = scalar_lea.sflag [#allocation6], %s380
        %s382 = sand.u32 %s63, 1
        %s383 = smul.addr %s382, 8
        %s384 = scalar_lea.vmem [#allocation5], %s383
        %p385 = pneg %p76
        %p386 = pneg %p73
        %p387 = pneg %p97
        %p388 = pneg %p94
        %p389 = pneg %p118
        %p390 = pneg %p115
        %p391 = pneg %p139
        %p392 = pneg %p136
        %p393 = pneg %p160
        %p394 = pneg %p157
        %p395 = pneg %p181
        %p396 = pneg %p178
        %p397 = pneg %p202
        %p398 = pneg %p199
        %p399 = pneg %p228
        %p400 = pneg %p225
        %s401 = sand.u32 %s215, 1
        %s402 = scalar_lea.sflag [#allocation4], %s401
        %s403 = sand.u32 %s215, 1
        %s404 = smul.addr %s403, 8
        %s405 = scalar_lea.vmem [#allocation11], %s404
        %s406 = smul.u32 8, %s29
        %s407 = smul.u32 8, %s29
        %v408 = vld [vmem:[%s347] sm:$0xff]
        %v409 = vld [vmem:[%s347 + $0x8] sm:$0xff]
        %v410 = vld [vmem:[%s347 + $0x10] sm:$0xff]
        %v411 = vld [vmem:[%s347 + $0x18] sm:$0xff]
        %v412 = vld [vmem:[%s347 + $0x20] sm:$0xff]
        %v413 = vld [vmem:[%s347 + $0x28] sm:$0xff]
        %v414 = vld [vmem:[%s347 + $0x30] sm:$0xff]
        %v415 = vld [vmem:[%s347 + $0x38] sm:$0xff]
        %v416 = vld [vmem:[%s347 + $0x40] sm:$0xff]
        %v417 = vld [vmem:[%s347 + $0x48] sm:$0xff]
        %v418 = vld [vmem:[%s347 + $0x50] sm:$0xff]
        %v419 = vld [vmem:[%s347 + $0x58] sm:$0xff]
        %v420 = vld [vmem:[%s347 + $0x60] sm:$0xff]
        %v421 = vld [vmem:[%s347 + $0x68] sm:$0xff]
        %v422 = vld [vmem:[%s347 + $0x70] sm:$0xff]
        %v423 = vld [vmem:[%s347 + $0x78] sm:$0xff]
        %v424 = vld [vmem:[%s356] sm:$0x1]
        %v425 = vld [vmem:[%s356 + $0x1] sm:$0x1]
        %v426 = vld [vmem:[%s356 + $0x2] sm:$0x1]
        %v427 = vld [vmem:[%s356 + $0x3] sm:$0x1]
        %v428 = vld [vmem:[%s356 + $0x4] sm:$0x1]
        %v429 = vld [vmem:[%s356 + $0x5] sm:$0x1]
        %v430 = vld [vmem:[%s356 + $0x6] sm:$0x1]
        %v431 = vld [vmem:[%s356 + $0x7] sm:$0x1]
        %v440 = vlaneseq
        %v441 = vshrl.u32 %v440, 7
        %v442 = vsub.s32 0, %v441
        %v443 = vrot.slane %v424, %v442
        %v444 = vlaneseq
        %v445 = vshrl.u32 %v444, 7
        %v446 = vsub.s32 0, %v445
        %v447 = vrot.slane %v425, %v446
        %v448 = vlaneseq
        %v449 = vshrl.u32 %v448, 7
        %v450 = vsub.s32 0, %v449
        %v451 = vrot.slane %v426, %v450
        %v452 = vlaneseq
        %v453 = vshrl.u32 %v452, 7
        %v454 = vsub.s32 0, %v453
        %v455 = vrot.slane %v427, %v454
        %v456 = vlaneseq
        %v457 = vshrl.u32 %v456, 7
        %v458 = vsub.s32 0, %v457
        %v459 = vrot.slane %v428, %v458
        %v460 = vlaneseq
        %v461 = vshrl.u32 %v460, 7
        %v462 = vsub.s32 0, %v461
        %v463 = vrot.slane %v429, %v462
        %v464 = vlaneseq
        %v465 = vshrl.u32 %v464, 7
        %v466 = vsub.s32 0, %v465
        %v467 = vrot.slane %v430, %v466
        %v468 = vlaneseq
        %v469 = vshrl.u32 %v468, 7
        %v470 = vsub.s32 0, %v469
        %v471 = vrot.slane %v431, %v470
        %v480 = vmul.f32 %v408, %v443
        %v481 = vmul.f32 %v409, %v443
        %v482 = vmul.f32 %v410, %v447
        %v483 = vmul.f32 %v411, %v447
        %v484 = vmul.f32 %v412, %v451
        %v485 = vmul.f32 %v413, %v451
        %v486 = vmul.f32 %v414, %v455
        %v487 = vmul.f32 %v415, %v455
        %v488 = vmul.f32 %v416, %v459
        %v489 = vmul.f32 %v417, %v459
        %v490 = vmul.f32 %v418, %v463
        %v491 = vmul.f32 %v419, %v463
        %v492 = vmul.f32 %v420, %v467
        %v493 = vmul.f32 %v421, %v467
        %v494 = vmul.f32 %v422, %v471
        %v495 = vmul.f32 %v423, %v471
        %vm496 = vcmask 130048
        %v497 = vsel %vm496, %v480, 0.0
        %498 = vadd.xlane.f32.xlu0 %v497
        %v499 = vpop.xlane.xlu0 %498
        %v500 = vsel %vm496, %v481, 0.0
        %501 = vadd.xlane.f32.xlu0 %v500
        %v502 = vpop.xlane.xlu0 %501
        %v503 = vsel %vm496, %v482, 0.0
        %504 = vadd.xlane.f32.xlu0 %v503
        %v505 = vpop.xlane.xlu0 %504
        %v506 = vsel %vm496, %v483, 0.0
        %507 = vadd.xlane.f32.xlu0 %v506
        %v508 = vpop.xlane.xlu0 %507
        %v509 = vsel %vm496, %v484, 0.0
        %510 = vadd.xlane.f32.xlu0 %v509
        %v511 = vpop.xlane.xlu0 %510
        %v512 = vsel %vm496, %v485, 0.0
        %513 = vadd.xlane.f32.xlu0 %v512
        %v514 = vpop.xlane.xlu0 %513
        %v515 = vsel %vm496, %v486, 0.0
        %516 = vadd.xlane.f32.xlu0 %v515
        %v517 = vpop.xlane.xlu0 %516
        %v518 = vsel %vm496, %v487, 0.0
        %519 = vadd.xlane.f32.xlu0 %v518
        %v520 = vpop.xlane.xlu0 %519
        %v521 = vsel %vm496, %v488, 0.0
        %522 = vadd.xlane.f32.xlu0 %v521
        %v523 = vpop.xlane.xlu0 %522
        %v524 = vsel %vm496, %v489, 0.0
        %525 = vadd.xlane.f32.xlu0 %v524
        %v526 = vpop.xlane.xlu0 %525
        %v527 = vsel %vm496, %v490, 0.0
        %528 = vadd.xlane.f32.xlu0 %v527
        %v529 = vpop.xlane.xlu0 %528
        %v530 = vsel %vm496, %v491, 0.0
        %531 = vadd.xlane.f32.xlu0 %v530
        %v532 = vpop.xlane.xlu0 %531
        %v533 = vsel %vm496, %v492, 0.0
        %534 = vadd.xlane.f32.xlu0 %v533
        %v535 = vpop.xlane.xlu0 %534
        %v536 = vsel %vm496, %v493, 0.0
        %537 = vadd.xlane.f32.xlu0 %v536
        %v538 = vpop.xlane.xlu0 %537
        %v539 = vsel %vm496, %v494, 0.0
        %540 = vadd.xlane.f32.xlu0 %v539
        %v541 = vpop.xlane.xlu0 %540
        %v542 = vsel %vm496, %v495, 0.0
        %543 = vadd.xlane.f32.xlu0 %v542
        %v544 = vpop.xlane.xlu0 %543
        %v545 = vld [vmem:[#allocation7] sm:$0xff]
        %v547 = vlaneseq
        %v548 = vshrl.u32 %v547, 7
        %v549 = vsub.s32 0, %v548
        %v550 = vrot.slane %v545, %v549
        %v551 = vlaneseq
        %v552 = vshrl.u32 %v551, 7
        %v553 = vsub.s32 1, %v552
        %v554 = vrot.slane %v545, %v553
        %v555 = vlaneseq
        %v556 = vshrl.u32 %v555, 7
        %v557 = vsub.s32 2, %v556
        %v558 = vrot.slane %v545, %v557
        %v559 = vlaneseq
        %v560 = vshrl.u32 %v559, 7
        %v561 = vsub.s32 3, %v560
        %v562 = vrot.slane %v545, %v561
        %v563 = vlaneseq
        %v564 = vshrl.u32 %v563, 7
        %v565 = vsub.s32 4, %v564
        %v566 = vrot.slane %v545, %v565
        %v567 = vlaneseq
        %v568 = vshrl.u32 %v567, 7
        %v569 = vsub.s32 5, %v568
        %v570 = vrot.slane %v545, %v569
        %v571 = vlaneseq
        %v572 = vshrl.u32 %v571, 7
        %v573 = vsub.s32 6, %v572
        %v574 = vrot.slane %v545, %v573
        %v575 = vlaneseq
        %v576 = vshrl.u32 %v575, 7
        %v577 = vsub.s32 7, %v576
        %v578 = vrot.slane %v545, %v577
        %v587 = vmul.f32 %v499, %v550
        %v588 = vmul.f32 %v499, %v554
        %v589 = vmul.f32 %v499, %v558
        %v590 = vmul.f32 %v499, %v562
        %v591 = vmul.f32 %v499, %v566
        %v592 = vmul.f32 %v499, %v570
        %v593 = vmul.f32 %v499, %v574
        %v594 = vmul.f32 %v499, %v578
        %v595 = vmul.f32 %v502, %v550
        %v596 = vmul.f32 %v502, %v554
        %v597 = vmul.f32 %v502, %v558
        %v598 = vmul.f32 %v502, %v562
        %v599 = vmul.f32 %v502, %v566
        %v600 = vmul.f32 %v502, %v570
        %v601 = vmul.f32 %v502, %v574
        %v602 = vmul.f32 %v502, %v578
        %v603 = vmul.f32 %v505, %v550
        %v604 = vmul.f32 %v505, %v554
        %v605 = vmul.f32 %v505, %v558
        %v606 = vmul.f32 %v505, %v562
        %v607 = vmul.f32 %v505, %v566
        %v608 = vmul.f32 %v505, %v570
        %v609 = vmul.f32 %v505, %v574
        %v610 = vmul.f32 %v505, %v578
        %v611 = vmul.f32 %v508, %v550
        %v612 = vmul.f32 %v508, %v554
        %v613 = vmul.f32 %v508, %v558
        %v614 = vmul.f32 %v508, %v562
        %v615 = vmul.f32 %v508, %v566
        %v616 = vmul.f32 %v508, %v570
        %v617 = vmul.f32 %v508, %v574
        %v618 = vmul.f32 %v508, %v578
        %v619 = vmul.f32 %v511, %v550
        %v620 = vmul.f32 %v511, %v554
        %v621 = vmul.f32 %v511, %v558
        %v622 = vmul.f32 %v511, %v562
        %v623 = vmul.f32 %v511, %v566
        %v624 = vmul.f32 %v511, %v570
        %v625 = vmul.f32 %v511, %v574
        %v626 = vmul.f32 %v511, %v578
        %v627 = vmul.f32 %v514, %v550
        %v628 = vmul.f32 %v514, %v554
        %v629 = vmul.f32 %v514, %v558
        %v630 = vmul.f32 %v514, %v562
        %v631 = vmul.f32 %v514, %v566
        %v632 = vmul.f32 %v514, %v570
        %v633 = vmul.f32 %v514, %v574
        %v634 = vmul.f32 %v514, %v578
        %v635 = vmul.f32 %v517, %v550
        %v636 = vmul.f32 %v517, %v554
        %v637 = vmul.f32 %v517, %v558
        %v638 = vmul.f32 %v517, %v562
        %v639 = vmul.f32 %v517, %v566
        %v640 = vmul.f32 %v517, %v570
        %v641 = vmul.f32 %v517, %v574
        %v642 = vmul.f32 %v517, %v578
        %v643 = vmul.f32 %v520, %v550
        %v644 = vmul.f32 %v520, %v554
        %v645 = vmul.f32 %v520, %v558
        %v646 = vmul.f32 %v520, %v562
        %v647 = vmul.f32 %v520, %v566
        %v648 = vmul.f32 %v520, %v570
        %v649 = vmul.f32 %v520, %v574
        %v650 = vmul.f32 %v520, %v578
        %v651 = vmul.f32 %v523, %v550
        %v652 = vmul.f32 %v523, %v554
        %v653 = vmul.f32 %v523, %v558
        %v654 = vmul.f32 %v523, %v562
        %v655 = vmul.f32 %v523, %v566
        %v656 = vmul.f32 %v523, %v570
        %v657 = vmul.f32 %v523, %v574
        %v658 = vmul.f32 %v523, %v578
        %v659 = vmul.f32 %v526, %v550
        %v660 = vmul.f32 %v526, %v554
        %v661 = vmul.f32 %v526, %v558
        %v662 = vmul.f32 %v526, %v562
        %v663 = vmul.f32 %v526, %v566
        %v664 = vmul.f32 %v526, %v570
        %v665 = vmul.f32 %v526, %v574
        %v666 = vmul.f32 %v526, %v578
        %v667 = vmul.f32 %v529, %v550
        %v668 = vmul.f32 %v529, %v554
        %v669 = vmul.f32 %v529, %v558
        %v670 = vmul.f32 %v529, %v562
        %v671 = vmul.f32 %v529, %v566
        %v672 = vmul.f32 %v529, %v570
        %v673 = vmul.f32 %v529, %v574
        %v674 = vmul.f32 %v529, %v578
        %v675 = vmul.f32 %v532, %v550
        %v676 = vmul.f32 %v532, %v554
        %v677 = vmul.f32 %v532, %v558
        %v678 = vmul.f32 %v532, %v562
        %v679 = vmul.f32 %v532, %v566
        %v680 = vmul.f32 %v532, %v570
        %v681 = vmul.f32 %v532, %v574
        %v682 = vmul.f32 %v532, %v578
        %v683 = vmul.f32 %v535, %v550
        %v684 = vmul.f32 %v535, %v554
        %v685 = vmul.f32 %v535, %v558
        %v686 = vmul.f32 %v535, %v562
        %v687 = vmul.f32 %v535, %v566
        %v688 = vmul.f32 %v535, %v570
        %v689 = vmul.f32 %v535, %v574
        %v690 = vmul.f32 %v535, %v578
        %v691 = vmul.f32 %v538, %v550
        %v692 = vmul.f32 %v538, %v554
        %v693 = vmul.f32 %v538, %v558
        %v694 = vmul.f32 %v538, %v562
        %v695 = vmul.f32 %v538, %v566
        %v696 = vmul.f32 %v538, %v570
        %v697 = vmul.f32 %v538, %v574
        %v698 = vmul.f32 %v538, %v578
        %v699 = vmul.f32 %v541, %v550
        %v700 = vmul.f32 %v541, %v554
        %v701 = vmul.f32 %v541, %v558
        %v702 = vmul.f32 %v541, %v562
        %v703 = vmul.f32 %v541, %v566
        %v704 = vmul.f32 %v541, %v570
        %v705 = vmul.f32 %v541, %v574
        %v706 = vmul.f32 %v541, %v578
        %v707 = vmul.f32 %v544, %v550
        %v708 = vmul.f32 %v544, %v554
        %v709 = vmul.f32 %v544, %v558
        %v710 = vmul.f32 %v544, %v562
        %v711 = vmul.f32 %v544, %v566
        %v712 = vmul.f32 %v544, %v570
        %v713 = vmul.f32 %v544, %v574
        %v714 = vmul.f32 %v544, %v578
        %v715 = vld [vmem:[%s3] sm:$0xff]
        %v717 = vlaneseq
        %v718 = vshrl.u32 %v717, 7
        %v719 = vsub.s32 0, %v718
        %v720 = vrot.slane %v715, %v719
        %v721 = vlaneseq
        %v722 = vshrl.u32 %v721, 7
        %v723 = vsub.s32 1, %v722
        %v724 = vrot.slane %v715, %v723
        %v725 = vlaneseq
        %v726 = vshrl.u32 %v725, 7
        %v727 = vsub.s32 2, %v726
        %v728 = vrot.slane %v715, %v727
        %v729 = vlaneseq
        %v730 = vshrl.u32 %v729, 7
        %v731 = vsub.s32 3, %v730
        %v732 = vrot.slane %v715, %v731
        %v733 = vlaneseq
        %v734 = vshrl.u32 %v733, 7
        %v735 = vsub.s32 4, %v734
        %v736 = vrot.slane %v715, %v735
        %v737 = vlaneseq
        %v738 = vshrl.u32 %v737, 7
        %v739 = vsub.s32 5, %v738
        %v740 = vrot.slane %v715, %v739
        %v741 = vlaneseq
        %v742 = vshrl.u32 %v741, 7
        %v743 = vsub.s32 6, %v742
        %v744 = vrot.slane %v715, %v743
        %v745 = vlaneseq
        %v746 = vshrl.u32 %v745, 7
        %v747 = vsub.s32 7, %v746
        %v748 = vrot.slane %v715, %v747
        %v757 = vadd.f32 %v587, %v720
        %v758 = vadd.f32 %v588, %v724
        %v759 = vadd.f32 %v589, %v728
        %v760 = vadd.f32 %v590, %v732
        %v761 = vadd.f32 %v591, %v736
        %v762 = vadd.f32 %v592, %v740
        %v763 = vadd.f32 %v593, %v744
        %v764 = vadd.f32 %v594, %v748
        %v765 = vadd.f32 %v595, %v720
        %v766 = vadd.f32 %v596, %v724
        %v767 = vadd.f32 %v597, %v728
        %v768 = vadd.f32 %v598, %v732
        %v769 = vadd.f32 %v599, %v736
        %v770 = vadd.f32 %v600, %v740
        %v771 = vadd.f32 %v601, %v744
        %v772 = vadd.f32 %v602, %v748
        %v773 = vadd.f32 %v603, %v720
        %v774 = vadd.f32 %v604, %v724
        %v775 = vadd.f32 %v605, %v728
        %v776 = vadd.f32 %v606, %v732
        %v777 = vadd.f32 %v607, %v736
        %v778 = vadd.f32 %v608, %v740
        %v779 = vadd.f32 %v609, %v744
        %v780 = vadd.f32 %v610, %v748
        %v781 = vadd.f32 %v611, %v720
        %v782 = vadd.f32 %v612, %v724
        %v783 = vadd.f32 %v613, %v728
        %v784 = vadd.f32 %v614, %v732
        %v785 = vadd.f32 %v615, %v736
        %v786 = vadd.f32 %v616, %v740
        %v787 = vadd.f32 %v617, %v744
        %v788 = vadd.f32 %v618, %v748
        %v789 = vadd.f32 %v619, %v720
        %v790 = vadd.f32 %v620, %v724
        %v791 = vadd.f32 %v621, %v728
        %v792 = vadd.f32 %v622, %v732
        %v793 = vadd.f32 %v623, %v736
        %v794 = vadd.f32 %v624, %v740
        %v795 = vadd.f32 %v625, %v744
        %v796 = vadd.f32 %v626, %v748
        %v797 = vadd.f32 %v627, %v720
        %v798 = vadd.f32 %v628, %v724
        %v799 = vadd.f32 %v629, %v728
        %v800 = vadd.f32 %v630, %v732
        %v801 = vadd.f32 %v631, %v736
        %v802 = vadd.f32 %v632, %v740
        %v803 = vadd.f32 %v633, %v744
        %v804 = vadd.f32 %v634, %v748
        %v805 = vadd.f32 %v635, %v720
        %v806 = vadd.f32 %v636, %v724
        %v807 = vadd.f32 %v637, %v728
        %v808 = vadd.f32 %v638, %v732
        %v809 = vadd.f32 %v639, %v736
        %v810 = vadd.f32 %v640, %v740
        %v811 = vadd.f32 %v641, %v744
        %v812 = vadd.f32 %v642, %v748
        %v813 = vadd.f32 %v643, %v720
        %v814 = vadd.f32 %v644, %v724
        %v815 = vadd.f32 %v645, %v728
        %v816 = vadd.f32 %v646, %v732
        %v817 = vadd.f32 %v647, %v736
        %v818 = vadd.f32 %v648, %v740
        %v819 = vadd.f32 %v649, %v744
        %v820 = vadd.f32 %v650, %v748
        %v821 = vadd.f32 %v651, %v720
        %v822 = vadd.f32 %v652, %v724
        %v823 = vadd.f32 %v653, %v728
        %v824 = vadd.f32 %v654, %v732
        %v825 = vadd.f32 %v655, %v736
        %v826 = vadd.f32 %v656, %v740
        %v827 = vadd.f32 %v657, %v744
        %v828 = vadd.f32 %v658, %v748
        %v829 = vadd.f32 %v659, %v720
        %v830 = vadd.f32 %v660, %v724
        %v831 = vadd.f32 %v661, %v728
        %v832 = vadd.f32 %v662, %v732
        %v833 = vadd.f32 %v663, %v736
        %v834 = vadd.f32 %v664, %v740
        %v835 = vadd.f32 %v665, %v744
        %v836 = vadd.f32 %v666, %v748
        %v837 = vadd.f32 %v667, %v720
        %v838 = vadd.f32 %v668, %v724
        %v839 = vadd.f32 %v669, %v728
        %v840 = vadd.f32 %v670, %v732
        %v841 = vadd.f32 %v671, %v736
        %v842 = vadd.f32 %v672, %v740
        %v843 = vadd.f32 %v673, %v744
        %v844 = vadd.f32 %v674, %v748
        %v845 = vadd.f32 %v675, %v720
        %v846 = vadd.f32 %v676, %v724
        %v847 = vadd.f32 %v677, %v728
        %v848 = vadd.f32 %v678, %v732
        %v849 = vadd.f32 %v679, %v736
        %v850 = vadd.f32 %v680, %v740
        %v851 = vadd.f32 %v681, %v744
        %v852 = vadd.f32 %v682, %v748
        %v853 = vadd.f32 %v683, %v720
        %v854 = vadd.f32 %v684, %v724
        %v855 = vadd.f32 %v685, %v728
        %v856 = vadd.f32 %v686, %v732
        %v857 = vadd.f32 %v687, %v736
        %v858 = vadd.f32 %v688, %v740
        %v859 = vadd.f32 %v689, %v744
        %v860 = vadd.f32 %v690, %v748
        %v861 = vadd.f32 %v691, %v720
        %v862 = vadd.f32 %v692, %v724
        %v863 = vadd.f32 %v693, %v728
        %v864 = vadd.f32 %v694, %v732
        %v865 = vadd.f32 %v695, %v736
        %v866 = vadd.f32 %v696, %v740
        %v867 = vadd.f32 %v697, %v744
        %v868 = vadd.f32 %v698, %v748
        %v869 = vadd.f32 %v699, %v720
        %v870 = vadd.f32 %v700, %v724
        %v871 = vadd.f32 %v701, %v728
        %v872 = vadd.f32 %v702, %v732
        %v873 = vadd.f32 %v703, %v736
        %v874 = vadd.f32 %v704, %v740
        %v875 = vadd.f32 %v705, %v744
        %v876 = vadd.f32 %v706, %v748
        %v877 = vadd.f32 %v707, %v720
        %v878 = vadd.f32 %v708, %v724
        %v879 = vadd.f32 %v709, %v728
        %v880 = vadd.f32 %v710, %v732
        %v881 = vadd.f32 %v711, %v736
        %v882 = vadd.f32 %v712, %v740
        %v883 = vadd.f32 %v713, %v744
        %v884 = vadd.f32 %v714, %v748
        %v885 = vmax.f32 %v757, 0.0
        %v886 = vmax.f32 %v758, 0.0
        %v887 = vmax.f32 %v759, 0.0
        %v888 = vmax.f32 %v760, 0.0
        %v889 = vmax.f32 %v761, 0.0
        %v890 = vmax.f32 %v762, 0.0
        %v891 = vmax.f32 %v763, 0.0
        %v892 = vmax.f32 %v764, 0.0
        %v893 = vmax.f32 %v765, 0.0
        %v894 = vmax.f32 %v766, 0.0
        %v895 = vmax.f32 %v767, 0.0
        %v896 = vmax.f32 %v768, 0.0
        %v897 = vmax.f32 %v769, 0.0
        %v898 = vmax.f32 %v770, 0.0
        %v899 = vmax.f32 %v771, 0.0
        %v900 = vmax.f32 %v772, 0.0
        %v901 = vmax.f32 %v773, 0.0
        %v902 = vmax.f32 %v774, 0.0
        %v903 = vmax.f32 %v775, 0.0
        %v904 = vmax.f32 %v776, 0.0
        %v905 = vmax.f32 %v777, 0.0
        %v906 = vmax.f32 %v778, 0.0
        %v907 = vmax.f32 %v779, 0.0
        %v908 = vmax.f32 %v780, 0.0
        %v909 = vmax.f32 %v781, 0.0
        %v910 = vmax.f32 %v782, 0.0
        %v911 = vmax.f32 %v783, 0.0
        %v912 = vmax.f32 %v784, 0.0
        %v913 = vmax.f32 %v785, 0.0
        %v914 = vmax.f32 %v786, 0.0
        %v915 = vmax.f32 %v787, 0.0
        %v916 = vmax.f32 %v788, 0.0
        %v917 = vmax.f32 %v789, 0.0
        %v918 = vmax.f32 %v790, 0.0
        %v919 = vmax.f32 %v791, 0.0
        %v920 = vmax.f32 %v792, 0.0
        %v921 = vmax.f32 %v793, 0.0
        %v922 = vmax.f32 %v794, 0.0
        %v923 = vmax.f32 %v795, 0.0
        %v924 = vmax.f32 %v796, 0.0
        %v925 = vmax.f32 %v797, 0.0
        %v926 = vmax.f32 %v798, 0.0
        %v927 = vmax.f32 %v799, 0.0
        %v928 = vmax.f32 %v800, 0.0
        %v929 = vmax.f32 %v801, 0.0
        %v930 = vmax.f32 %v802, 0.0
        %v931 = vmax.f32 %v803, 0.0
        %v932 = vmax.f32 %v804, 0.0
        %v933 = vmax.f32 %v805, 0.0
        %v934 = vmax.f32 %v806, 0.0
        %v935 = vmax.f32 %v807, 0.0
        %v936 = vmax.f32 %v808, 0.0
        %v937 = vmax.f32 %v809, 0.0
        %v938 = vmax.f32 %v810, 0.0
        %v939 = vmax.f32 %v811, 0.0
        %v940 = vmax.f32 %v812, 0.0
        %v941 = vmax.f32 %v813, 0.0
        %v942 = vmax.f32 %v814, 0.0
        %v943 = vmax.f32 %v815, 0.0
        %v944 = vmax.f32 %v816, 0.0
        %v945 = vmax.f32 %v817, 0.0
        %v946 = vmax.f32 %v818, 0.0
        %v947 = vmax.f32 %v819, 0.0
        %v948 = vmax.f32 %v820, 0.0
        %v949 = vmax.f32 %v821, 0.0
        %v950 = vmax.f32 %v822, 0.0
        %v951 = vmax.f32 %v823, 0.0
        %v952 = vmax.f32 %v824, 0.0
        %v953 = vmax.f32 %v825, 0.0
        %v954 = vmax.f32 %v826, 0.0
        %v955 = vmax.f32 %v827, 0.0
        %v956 = vmax.f32 %v828, 0.0
        %v957 = vmax.f32 %v829, 0.0
        %v958 = vmax.f32 %v830, 0.0
        %v959 = vmax.f32 %v831, 0.0
        %v960 = vmax.f32 %v832, 0.0
        %v961 = vmax.f32 %v833, 0.0
        %v962 = vmax.f32 %v834, 0.0
        %v963 = vmax.f32 %v835, 0.0
        %v964 = vmax.f32 %v836, 0.0
        %v965 = vmax.f32 %v837, 0.0
        %v966 = vmax.f32 %v838, 0.0
        %v967 = vmax.f32 %v839, 0.0
        %v968 = vmax.f32 %v840, 0.0
        %v969 = vmax.f32 %v841, 0.0
        %v970 = vmax.f32 %v842, 0.0
        %v971 = vmax.f32 %v843, 0.0
        %v972 = vmax.f32 %v844, 0.0
        %v973 = vmax.f32 %v845, 0.0
        %v974 = vmax.f32 %v846, 0.0
        %v975 = vmax.f32 %v847, 0.0
        %v976 = vmax.f32 %v848, 0.0
        %v977 = vmax.f32 %v849, 0.0
        %v978 = vmax.f32 %v850, 0.0
        %v979 = vmax.f32 %v851, 0.0
        %v980 = vmax.f32 %v852, 0.0
        %v981 = vmax.f32 %v853, 0.0
        %v982 = vmax.f32 %v854, 0.0
        %v983 = vmax.f32 %v855, 0.0
        %v984 = vmax.f32 %v856, 0.0
        %v985 = vmax.f32 %v857, 0.0
        %v986 = vmax.f32 %v858, 0.0
        %v987 = vmax.f32 %v859, 0.0
        %v988 = vmax.f32 %v860, 0.0
        %v989 = vmax.f32 %v861, 0.0
        %v990 = vmax.f32 %v862, 0.0
        %v991 = vmax.f32 %v863, 0.0
        %v992 = vmax.f32 %v864, 0.0
        %v993 = vmax.f32 %v865, 0.0
        %v994 = vmax.f32 %v866, 0.0
        %v995 = vmax.f32 %v867, 0.0
        %v996 = vmax.f32 %v868, 0.0
        %v997 = vmax.f32 %v869, 0.0
        %v998 = vmax.f32 %v870, 0.0
        %v999 = vmax.f32 %v871, 0.0
        %v1000 = vmax.f32 %v872, 0.0
        %v1001 = vmax.f32 %v873, 0.0
        %v1002 = vmax.f32 %v874, 0.0
        %v1003 = vmax.f32 %v875, 0.0
        %v1004 = vmax.f32 %v876, 0.0
        %v1005 = vmax.f32 %v877, 0.0
        %v1006 = vmax.f32 %v878, 0.0
        %v1007 = vmax.f32 %v879, 0.0
        %v1008 = vmax.f32 %v880, 0.0
        %v1009 = vmax.f32 %v881, 0.0
        %v1010 = vmax.f32 %v882, 0.0
        %v1011 = vmax.f32 %v883, 0.0
        %v1012 = vmax.f32 %v884, 0.0
        %v1013 = vadd.f32 %v885, %v893
        %v1014 = vrot.slane %v1013, 4
        %v1015 = vadd.f32 %v1013, %v1014
        %v1016 = vrot.slane %v1015, 2
        %v1017 = vadd.f32 %v1015, %v1016
        %v1018 = vrot.slane %v1017, 1
        %v1019 = vadd.f32 %v1017, %v1018
        %v1020 = vadd.f32 %v886, %v894
        %v1021 = vrot.slane %v1020, 4
        %v1022 = vadd.f32 %v1020, %v1021
        %v1023 = vrot.slane %v1022, 2
        %v1024 = vadd.f32 %v1022, %v1023
        %v1025 = vrot.slane %v1024, 1
        %v1026 = vadd.f32 %v1024, %v1025
        %v1027 = vadd.f32 %v887, %v895
        %v1028 = vrot.slane %v1027, 4
        %v1029 = vadd.f32 %v1027, %v1028
        %v1030 = vrot.slane %v1029, 2
        %v1031 = vadd.f32 %v1029, %v1030
        %v1032 = vrot.slane %v1031, 1
        %v1033 = vadd.f32 %v1031, %v1032
        %v1034 = vadd.f32 %v888, %v896
        %v1035 = vrot.slane %v1034, 4
        %v1036 = vadd.f32 %v1034, %v1035
        %v1037 = vrot.slane %v1036, 2
        %v1038 = vadd.f32 %v1036, %v1037
        %v1039 = vrot.slane %v1038, 1
        %v1040 = vadd.f32 %v1038, %v1039
        %v1041 = vadd.f32 %v889, %v897
        %v1042 = vrot.slane %v1041, 4
        %v1043 = vadd.f32 %v1041, %v1042
        %v1044 = vrot.slane %v1043, 2
        %v1045 = vadd.f32 %v1043, %v1044
        %v1046 = vrot.slane %v1045, 1
        %v1047 = vadd.f32 %v1045, %v1046
        %v1048 = vadd.f32 %v890, %v898
        %v1049 = vrot.slane %v1048, 4
        %v1050 = vadd.f32 %v1048, %v1049
        %v1051 = vrot.slane %v1050, 2
        %v1052 = vadd.f32 %v1050, %v1051
        %v1053 = vrot.slane %v1052, 1
        %v1054 = vadd.f32 %v1052, %v1053
        %v1055 = vadd.f32 %v891, %v899
        %v1056 = vrot.slane %v1055, 4
        %v1057 = vadd.f32 %v1055, %v1056
        %v1058 = vrot.slane %v1057, 2
        %v1059 = vadd.f32 %v1057, %v1058
        %v1060 = vrot.slane %v1059, 1
        %v1061 = vadd.f32 %v1059, %v1060
        %vm1062 = vcmask 850944
        %v1063 = vsel %vm1062, %v892, 0.0
        %v1064 = vsel %vm1062, %v900, 0.0
        %v1065 = vadd.f32 %v1063, %v1064
        %v1066 = vrot.slane %v1065, 4
        %v1067 = vadd.f32 %v1065, %v1066
        %v1068 = vrot.slane %v1067, 2
        %v1069 = vadd.f32 %v1067, %v1068
        %v1070 = vrot.slane %v1069, 1
        %v1071 = vadd.f32 %v1069, %v1070
        %v1072 = vadd.f32 %v901, %v909
        %v1073 = vrot.slane %v1072, 4
        %v1074 = vadd.f32 %v1072, %v1073
        %v1075 = vrot.slane %v1074, 2
        %v1076 = vadd.f32 %v1074, %v1075
        %v1077 = vrot.slane %v1076, 1
        %v1078 = vadd.f32 %v1076, %v1077
        %v1079 = vadd.f32 %v902, %v910
        %v1080 = vrot.slane %v1079, 4
        %v1081 = vadd.f32 %v1079, %v1080
        %v1082 = vrot.slane %v1081, 2
        %v1083 = vadd.f32 %v1081, %v1082
        %v1084 = vrot.slane %v1083, 1
        %v1085 = vadd.f32 %v1083, %v1084
        %v1086 = vadd.f32 %v903, %v911
        %v1087 = vrot.slane %v1086, 4
        %v1088 = vadd.f32 %v1086, %v1087
        %v1089 = vrot.slane %v1088, 2
        %v1090 = vadd.f32 %v1088, %v1089
        %v1091 = vrot.slane %v1090, 1
        %v1092 = vadd.f32 %v1090, %v1091
        %v1093 = vadd.f32 %v904, %v912
        %v1094 = vrot.slane %v1093, 4
        %v1095 = vadd.f32 %v1093, %v1094
        %v1096 = vrot.slane %v1095, 2
        %v1097 = vadd.f32 %v1095, %v1096
        %v1098 = vrot.slane %v1097, 1
        %v1099 = vadd.f32 %v1097, %v1098
        %v1100 = vadd.f32 %v905, %v913
        %v1101 = vrot.slane %v1100, 4
        %v1102 = vadd.f32 %v1100, %v1101
        %v1103 = vrot.slane %v1102, 2
        %v1104 = vadd.f32 %v1102, %v1103
        %v1105 = vrot.slane %v1104, 1
        %v1106 = vadd.f32 %v1104, %v1105
        %v1107 = vadd.f32 %v906, %v914
        %v1108 = vrot.slane %v1107, 4
        %v1109 = vadd.f32 %v1107, %v1108
        %v1110 = vrot.slane %v1109, 2
        %v1111 = vadd.f32 %v1109, %v1110
        %v1112 = vrot.slane %v1111, 1
        %v1113 = vadd.f32 %v1111, %v1112
        %v1114 = vadd.f32 %v907, %v915
        %v1115 = vrot.slane %v1114, 4
        %v1116 = vadd.f32 %v1114, %v1115
        %v1117 = vrot.slane %v1116, 2
        %v1118 = vadd.f32 %v1116, %v1117
        %v1119 = vrot.slane %v1118, 1
        %v1120 = vadd.f32 %v1118, %v1119
        %v1121 = vsel %vm1062, %v908, 0.0
        %v1122 = vsel %vm1062, %v916, 0.0
        %v1123 = vadd.f32 %v1121, %v1122
        %v1124 = vrot.slane %v1123, 4
        %v1125 = vadd.f32 %v1123, %v1124
        %v1126 = vrot.slane %v1125, 2
        %v1127 = vadd.f32 %v1125, %v1126
        %v1128 = vrot.slane %v1127, 1
        %v1129 = vadd.f32 %v1127, %v1128
        %v1130 = vadd.f32 %v917, %v925
        %v1131 = vrot.slane %v1130, 4
        %v1132 = vadd.f32 %v1130, %v1131
        %v1133 = vrot.slane %v1132, 2
        %v1134 = vadd.f32 %v1132, %v1133
        %v1135 = vrot.slane %v1134, 1
        %v1136 = vadd.f32 %v1134, %v1135
        %v1137 = vadd.f32 %v918, %v926
        %v1138 = vrot.slane %v1137, 4
        %v1139 = vadd.f32 %v1137, %v1138
        %v1140 = vrot.slane %v1139, 2
        %v1141 = vadd.f32 %v1139, %v1140
        %v1142 = vrot.slane %v1141, 1
        %v1143 = vadd.f32 %v1141, %v1142
        %v1144 = vadd.f32 %v919, %v927
        %v1145 = vrot.slane %v1144, 4
        %v1146 = vadd.f32 %v1144, %v1145
        %v1147 = vrot.slane %v1146, 2
        %v1148 = vadd.f32 %v1146, %v1147
        %v1149 = vrot.slane %v1148, 1
        %v1150 = vadd.f32 %v1148, %v1149
        %v1151 = vadd.f32 %v920, %v928
        %v1152 = vrot.slane %v1151, 4
        %v1153 = vadd.f32 %v1151, %v1152
        %v1154 = vrot.slane %v1153, 2
        %v1155 = vadd.f32 %v1153, %v1154
        %v1156 = vrot.slane %v1155, 1
        %v1157 = vadd.f32 %v1155, %v1156
        %v1158 = vadd.f32 %v921, %v929
        %v1159 = vrot.slane %v1158, 4
        %v1160 = vadd.f32 %v1158, %v1159
        %v1161 = vrot.slane %v1160, 2
        %v1162 = vadd.f32 %v1160, %v1161
        %v1163 = vrot.slane %v1162, 1
        %v1164 = vadd.f32 %v1162, %v1163
        %v1165 = vadd.f32 %v922, %v930
        %v1166 = vrot.slane %v1165, 4
        %v1167 = vadd.f32 %v1165, %v1166
        %v1168 = vrot.slane %v1167, 2
        %v1169 = vadd.f32 %v1167, %v1168
        %v1170 = vrot.slane %v1169, 1
        %v1171 = vadd.f32 %v1169, %v1170
        %v1172 = vadd.f32 %v923, %v931
        %v1173 = vrot.slane %v1172, 4
        %v1174 = vadd.f32 %v1172, %v1173
        %v1175 = vrot.slane %v1174, 2
        %v1176 = vadd.f32 %v1174, %v1175
        %v1177 = vrot.slane %v1176, 1
        %v1178 = vadd.f32 %v1176, %v1177
        %v1179 = vsel %vm1062, %v924, 0.0
        %v1180 = vsel %vm1062, %v932, 0.0
        %v1181 = vadd.f32 %v1179, %v1180
        %v1182 = vrot.slane %v1181, 4
        %v1183 = vadd.f32 %v1181, %v1182
        %v1184 = vrot.slane %v1183, 2
        %v1185 = vadd.f32 %v1183, %v1184
        %v1186 = vrot.slane %v1185, 1
        %v1187 = vadd.f32 %v1185, %v1186
        %v1188 = vadd.f32 %v933, %v941
        %v1189 = vrot.slane %v1188, 4
        %v1190 = vadd.f32 %v1188, %v1189
        %v1191 = vrot.slane %v1190, 2
        %v1192 = vadd.f32 %v1190, %v1191
        %v1193 = vrot.slane %v1192, 1
        %v1194 = vadd.f32 %v1192, %v1193
        %v1195 = vadd.f32 %v934, %v942
        %v1196 = vrot.slane %v1195, 4
        %v1197 = vadd.f32 %v1195, %v1196
        %v1198 = vrot.slane %v1197, 2
        %v1199 = vadd.f32 %v1197, %v1198
        %v1200 = vrot.slane %v1199, 1
        %v1201 = vadd.f32 %v1199, %v1200
        %v1202 = vadd.f32 %v935, %v943
        %v1203 = vrot.slane %v1202, 4
        %v1204 = vadd.f32 %v1202, %v1203
        %v1205 = vrot.slane %v1204, 2
        %v1206 = vadd.f32 %v1204, %v1205
        %v1207 = vrot.slane %v1206, 1
        %v1208 = vadd.f32 %v1206, %v1207
        %v1209 = vadd.f32 %v936, %v944
        %v1210 = vrot.slane %v1209, 4
        %v1211 = vadd.f32 %v1209, %v1210
        %v1212 = vrot.slane %v1211, 2
        %v1213 = vadd.f32 %v1211, %v1212
        %v1214 = vrot.slane %v1213, 1
        %v1215 = vadd.f32 %v1213, %v1214
        %v1216 = vadd.f32 %v937, %v945
        %v1217 = vrot.slane %v1216, 4
        %v1218 = vadd.f32 %v1216, %v1217
        %v1219 = vrot.slane %v1218, 2
        %v1220 = vadd.f32 %v1218, %v1219
        %v1221 = vrot.slane %v1220, 1
        %v1222 = vadd.f32 %v1220, %v1221
        %v1223 = vadd.f32 %v938, %v946
        %v1224 = vrot.slane %v1223, 4
        %v1225 = vadd.f32 %v1223, %v1224
        %v1226 = vrot.slane %v1225, 2
        %v1227 = vadd.f32 %v1225, %v1226
        %v1228 = vrot.slane %v1227, 1
        %v1229 = vadd.f32 %v1227, %v1228
        %v1230 = vadd.f32 %v939, %v947
        %v1231 = vrot.slane %v1230, 4
        %v1232 = vadd.f32 %v1230, %v1231
        %v1233 = vrot.slane %v1232, 2
        %v1234 = vadd.f32 %v1232, %v1233
        %v1235 = vrot.slane %v1234, 1
        %v1236 = vadd.f32 %v1234, %v1235
        %v1237 = vsel %vm1062, %v940, 0.0
        %v1238 = vsel %vm1062, %v948, 0.0
        %v1239 = vadd.f32 %v1237, %v1238
        %v1240 = vrot.slane %v1239, 4
        %v1241 = vadd.f32 %v1239, %v1240
        %v1242 = vrot.slane %v1241, 2
        %v1243 = vadd.f32 %v1241, %v1242
        %v1244 = vrot.slane %v1243, 1
        %v1245 = vadd.f32 %v1243, %v1244
        %v1246 = vadd.f32 %v949, %v957
        %v1247 = vrot.slane %v1246, 4
        %v1248 = vadd.f32 %v1246, %v1247
        %v1249 = vrot.slane %v1248, 2
        %v1250 = vadd.f32 %v1248, %v1249
        %v1251 = vrot.slane %v1250, 1
        %v1252 = vadd.f32 %v1250, %v1251
        %v1253 = vadd.f32 %v950, %v958
        %v1254 = vrot.slane %v1253, 4
        %v1255 = vadd.f32 %v1253, %v1254
        %v1256 = vrot.slane %v1255, 2
        %v1257 = vadd.f32 %v1255, %v1256
        %v1258 = vrot.slane %v1257, 1
        %v1259 = vadd.f32 %v1257, %v1258
        %v1260 = vadd.f32 %v951, %v959
        %v1261 = vrot.slane %v1260, 4
        %v1262 = vadd.f32 %v1260, %v1261
        %v1263 = vrot.slane %v1262, 2
        %v1264 = vadd.f32 %v1262, %v1263
        %v1265 = vrot.slane %v1264, 1
        %v1266 = vadd.f32 %v1264, %v1265
        %v1267 = vadd.f32 %v952, %v960
        %v1268 = vrot.slane %v1267, 4
        %v1269 = vadd.f32 %v1267, %v1268
        %v1270 = vrot.slane %v1269, 2
        %v1271 = vadd.f32 %v1269, %v1270
        %v1272 = vrot.slane %v1271, 1
        %v1273 = vadd.f32 %v1271, %v1272
        %v1274 = vadd.f32 %v953, %v961
        %v1275 = vrot.slane %v1274, 4
        %v1276 = vadd.f32 %v1274, %v1275
        %v1277 = vrot.slane %v1276, 2
        %v1278 = vadd.f32 %v1276, %v1277
        %v1279 = vrot.slane %v1278, 1
        %v1280 = vadd.f32 %v1278, %v1279
        %v1281 = vadd.f32 %v954, %v962
        %v1282 = vrot.slane %v1281, 4
        %v1283 = vadd.f32 %v1281, %v1282
        %v1284 = vrot.slane %v1283, 2
        %v1285 = vadd.f32 %v1283, %v1284
        %v1286 = vrot.slane %v1285, 1
        %v1287 = vadd.f32 %v1285, %v1286
        %v1288 = vadd.f32 %v955, %v963
        %v1289 = vrot.slane %v1288, 4
        %v1290 = vadd.f32 %v1288, %v1289
        %v1291 = vrot.slane %v1290, 2
        %v1292 = vadd.f32 %v1290, %v1291
        %v1293 = vrot.slane %v1292, 1
        %v1294 = vadd.f32 %v1292, %v1293
        %v1295 = vsel %vm1062, %v956, 0.0
        %v1296 = vsel %vm1062, %v964, 0.0
        %v1297 = vadd.f32 %v1295, %v1296
        %v1298 = vrot.slane %v1297, 4
        %v1299 = vadd.f32 %v1297, %v1298
        %v1300 = vrot.slane %v1299, 2
        %v1301 = vadd.f32 %v1299, %v1300
        %v1302 = vrot.slane %v1301, 1
        %v1303 = vadd.f32 %v1301, %v1302
        %v1304 = vadd.f32 %v965, %v973
        %v1305 = vrot.slane %v1304, 4
        %v1306 = vadd.f32 %v1304, %v1305
        %v1307 = vrot.slane %v1306, 2
        %v1308 = vadd.f32 %v1306, %v1307
        %v1309 = vrot.slane %v1308, 1
        %v1310 = vadd.f32 %v1308, %v1309
        %v1311 = vadd.f32 %v966, %v974
        %v1312 = vrot.slane %v1311, 4
        %v1313 = vadd.f32 %v1311, %v1312
        %v1314 = vrot.slane %v1313, 2
        %v1315 = vadd.f32 %v1313, %v1314
        %v1316 = vrot.slane %v1315, 1
        %v1317 = vadd.f32 %v1315, %v1316
        %v1318 = vadd.f32 %v967, %v975
        %v1319 = vrot.slane %v1318, 4
        %v1320 = vadd.f32 %v1318, %v1319
        %v1321 = vrot.slane %v1320, 2
        %v1322 = vadd.f32 %v1320, %v1321
        %v1323 = vrot.slane %v1322, 1
        %v1324 = vadd.f32 %v1322, %v1323
        %v1325 = vadd.f32 %v968, %v976
        %v1326 = vrot.slane %v1325, 4
        %v1327 = vadd.f32 %v1325, %v1326
        %v1328 = vrot.slane %v1327, 2
        %v1329 = vadd.f32 %v1327, %v1328
        %v1330 = vrot.slane %v1329, 1
        %v1331 = vadd.f32 %v1329, %v1330
        %v1332 = vadd.f32 %v969, %v977
        %v1333 = vrot.slane %v1332, 4
        %v1334 = vadd.f32 %v1332, %v1333
        %v1335 = vrot.slane %v1334, 2
        %v1336 = vadd.f32 %v1334, %v1335
        %v1337 = vrot.slane %v1336, 1
        %v1338 = vadd.f32 %v1336, %v1337
        %v1339 = vadd.f32 %v970, %v978
        %v1340 = vrot.slane %v1339, 4
        %v1341 = vadd.f32 %v1339, %v1340
        %v1342 = vrot.slane %v1341, 2
        %v1343 = vadd.f32 %v1341, %v1342
        %v1344 = vrot.slane %v1343, 1
        %v1345 = vadd.f32 %v1343, %v1344
        %v1346 = vadd.f32 %v971, %v979
        %v1347 = vrot.slane %v1346, 4
        %v1348 = vadd.f32 %v1346, %v1347
        %v1349 = vrot.slane %v1348, 2
        %v1350 = vadd.f32 %v1348, %v1349
        %v1351 = vrot.slane %v1350, 1
        %v1352 = vadd.f32 %v1350, %v1351
        %v1353 = vsel %vm1062, %v972, 0.0
        %v1354 = vsel %vm1062, %v980, 0.0
        %v1355 = vadd.f32 %v1353, %v1354
        %v1356 = vrot.slane %v1355, 4
        %v1357 = vadd.f32 %v1355, %v1356
        %v1358 = vrot.slane %v1357, 2
        %v1359 = vadd.f32 %v1357, %v1358
        %v1360 = vrot.slane %v1359, 1
        %v1361 = vadd.f32 %v1359, %v1360
        %v1362 = vadd.f32 %v981, %v989
        %v1363 = vrot.slane %v1362, 4
        %v1364 = vadd.f32 %v1362, %v1363
        %v1365 = vrot.slane %v1364, 2
        %v1366 = vadd.f32 %v1364, %v1365
        %v1367 = vrot.slane %v1366, 1
        %v1368 = vadd.f32 %v1366, %v1367
        %v1369 = vadd.f32 %v982, %v990
        %v1370 = vrot.slane %v1369, 4
        %v1371 = vadd.f32 %v1369, %v1370
        %v1372 = vrot.slane %v1371, 2
        %v1373 = vadd.f32 %v1371, %v1372
        %v1374 = vrot.slane %v1373, 1
        %v1375 = vadd.f32 %v1373, %v1374
        %v1376 = vadd.f32 %v983, %v991
        %v1377 = vrot.slane %v1376, 4
        %v1378 = vadd.f32 %v1376, %v1377
        %v1379 = vrot.slane %v1378, 2
        %v1380 = vadd.f32 %v1378, %v1379
        %v1381 = vrot.slane %v1380, 1
        %v1382 = vadd.f32 %v1380, %v1381
        %v1383 = vadd.f32 %v984, %v992
        %v1384 = vrot.slane %v1383, 4
        %v1385 = vadd.f32 %v1383, %v1384
        %v1386 = vrot.slane %v1385, 2
        %v1387 = vadd.f32 %v1385, %v1386
        %v1388 = vrot.slane %v1387, 1
        %v1389 = vadd.f32 %v1387, %v1388
        %v1390 = vadd.f32 %v985, %v993
        %v1391 = vrot.slane %v1390, 4
        %v1392 = vadd.f32 %v1390, %v1391
        %v1393 = vrot.slane %v1392, 2
        %v1394 = vadd.f32 %v1392, %v1393
        %v1395 = vrot.slane %v1394, 1
        %v1396 = vadd.f32 %v1394, %v1395
        %v1397 = vadd.f32 %v986, %v994
        %v1398 = vrot.slane %v1397, 4
        %v1399 = vadd.f32 %v1397, %v1398
        %v1400 = vrot.slane %v1399, 2
        %v1401 = vadd.f32 %v1399, %v1400
        %v1402 = vrot.slane %v1401, 1
        %v1403 = vadd.f32 %v1401, %v1402
        %v1404 = vadd.f32 %v987, %v995
        %v1405 = vrot.slane %v1404, 4
        %v1406 = vadd.f32 %v1404, %v1405
        %v1407 = vrot.slane %v1406, 2
        %v1408 = vadd.f32 %v1406, %v1407
        %v1409 = vrot.slane %v1408, 1
        %v1410 = vadd.f32 %v1408, %v1409
        %v1411 = vsel %vm1062, %v988, 0.0
        %v1412 = vsel %vm1062, %v996, 0.0
        %v1413 = vadd.f32 %v1411, %v1412
        %v1414 = vrot.slane %v1413, 4
        %v1415 = vadd.f32 %v1413, %v1414
        %v1416 = vrot.slane %v1415, 2
        %v1417 = vadd.f32 %v1415, %v1416
        %v1418 = vrot.slane %v1417, 1
        %v1419 = vadd.f32 %v1417, %v1418
        %v1420 = vadd.f32 %v997, %v1005
        %v1421 = vrot.slane %v1420, 4
        %v1422 = vadd.f32 %v1420, %v1421
        %v1423 = vrot.slane %v1422, 2
        %v1424 = vadd.f32 %v1422, %v1423
        %v1425 = vrot.slane %v1424, 1
        %v1426 = vadd.f32 %v1424, %v1425
        %v1427 = vadd.f32 %v998, %v1006
        %v1428 = vrot.slane %v1427, 4
        %v1429 = vadd.f32 %v1427, %v1428
        %v1430 = vrot.slane %v1429, 2
        %v1431 = vadd.f32 %v1429, %v1430
        %v1432 = vrot.slane %v1431, 1
        %v1433 = vadd.f32 %v1431, %v1432
        %v1434 = vadd.f32 %v999, %v1007
        %v1435 = vrot.slane %v1434, 4
        %v1436 = vadd.f32 %v1434, %v1435
        %v1437 = vrot.slane %v1436, 2
        %v1438 = vadd.f32 %v1436, %v1437
        %v1439 = vrot.slane %v1438, 1
        %v1440 = vadd.f32 %v1438, %v1439
        %v1441 = vadd.f32 %v1000, %v1008
        %v1442 = vrot.slane %v1441, 4
        %v1443 = vadd.f32 %v1441, %v1442
        %v1444 = vrot.slane %v1443, 2
        %v1445 = vadd.f32 %v1443, %v1444
        %v1446 = vrot.slane %v1445, 1
        %v1447 = vadd.f32 %v1445, %v1446
        %v1448 = vadd.f32 %v1001, %v1009
        %v1449 = vrot.slane %v1448, 4
        %v1450 = vadd.f32 %v1448, %v1449
        %v1451 = vrot.slane %v1450, 2
        %v1452 = vadd.f32 %v1450, %v1451
        %v1453 = vrot.slane %v1452, 1
        %v1454 = vadd.f32 %v1452, %v1453
        %v1455 = vadd.f32 %v1002, %v1010
        %v1456 = vrot.slane %v1455, 4
        %v1457 = vadd.f32 %v1455, %v1456
        %v1458 = vrot.slane %v1457, 2
        %v1459 = vadd.f32 %v1457, %v1458
        %v1460 = vrot.slane %v1459, 1
        %v1461 = vadd.f32 %v1459, %v1460
        %v1462 = vadd.f32 %v1003, %v1011
        %v1463 = vrot.slane %v1462, 4
        %v1464 = vadd.f32 %v1462, %v1463
        %v1465 = vrot.slane %v1464, 2
        %v1466 = vadd.f32 %v1464, %v1465
        %v1467 = vrot.slane %v1466, 1
        %v1468 = vadd.f32 %v1466, %v1467
        %v1469 = vsel %vm1062, %v1004, 0.0
        %v1470 = vsel %vm1062, %v1012, 0.0
        %v1471 = vadd.f32 %v1469, %v1470
        %v1472 = vrot.slane %v1471, 4
        %v1473 = vadd.f32 %v1471, %v1472
        %v1474 = vrot.slane %v1473, 2
        %v1475 = vadd.f32 %v1473, %v1474
        %v1476 = vrot.slane %v1475, 1
        %v1477 = vadd.f32 %v1475, %v1476
        %v1478 = vrcp.pop 16.0
        %v1479 = vmul.f32 %v1019, %v1478
        %v1480 = vmul.f32 %v1026, %v1478
        %v1481 = vmul.f32 %v1033, %v1478
        %v1482 = vmul.f32 %v1040, %v1478
        %v1483 = vmul.f32 %v1047, %v1478
        %v1484 = vmul.f32 %v1054, %v1478
        %v1485 = vmul.f32 %v1061, %v1478
        %v1486 = vmul.f32 %v1071, %v1478
        %v1487 = vmul.f32 %v1078, %v1478
        %v1488 = vmul.f32 %v1085, %v1478
        %v1489 = vmul.f32 %v1092, %v1478
        %v1490 = vmul.f32 %v1099, %v1478
        %v1491 = vmul.f32 %v1106, %v1478
        %v1492 = vmul.f32 %v1113, %v1478
        %v1493 = vmul.f32 %v1120, %v1478
        %v1494 = vmul.f32 %v1129, %v1478
        %v1495 = vmul.f32 %v1136, %v1478
        %v1496 = vmul.f32 %v1143, %v1478
        %v1497 = vmul.f32 %v1150, %v1478
        %v1498 = vmul.f32 %v1157, %v1478
        %v1499 = vmul.f32 %v1164, %v1478
        %v1500 = vmul.f32 %v1171, %v1478
        %v1501 = vmul.f32 %v1178, %v1478
        %v1502 = vmul.f32 %v1187, %v1478
        %v1503 = vmul.f32 %v1194, %v1478
        %v1504 = vmul.f32 %v1201, %v1478
        %v1505 = vmul.f32 %v1208, %v1478
        %v1506 = vmul.f32 %v1215, %v1478
        %v1507 = vmul.f32 %v1222, %v1478
        %v1508 = vmul.f32 %v1229, %v1478
        %v1509 = vmul.f32 %v1236, %v1478
        %v1510 = vmul.f32 %v1245, %v1478
        %v1511 = vmul.f32 %v1252, %v1478
        %v1512 = vmul.f32 %v1259, %v1478
        %v1513 = vmul.f32 %v1266, %v1478
        %v1514 = vmul.f32 %v1273, %v1478
        %v1515 = vmul.f32 %v1280, %v1478
        %v1516 = vmul.f32 %v1287, %v1478
        %v1517 = vmul.f32 %v1294, %v1478
        %v1518 = vmul.f32 %v1303, %v1478
        %v1519 = vmul.f32 %v1310, %v1478
        %v1520 = vmul.f32 %v1317, %v1478
        %v1521 = vmul.f32 %v1324, %v1478
        %v1522 = vmul.f32 %v1331, %v1478
        %v1523 = vmul.f32 %v1338, %v1478
        %v1524 = vmul.f32 %v1345, %v1478
        %v1525 = vmul.f32 %v1352, %v1478
        %v1526 = vmul.f32 %v1361, %v1478
        %v1527 = vmul.f32 %v1368, %v1478
        %v1528 = vmul.f32 %v1375, %v1478
        %v1529 = vmul.f32 %v1382, %v1478
        %v1530 = vmul.f32 %v1389, %v1478
        %v1531 = vmul.f32 %v1396, %v1478
        %v1532 = vmul.f32 %v1403, %v1478
        %v1533 = vmul.f32 %v1410, %v1478
        %v1534 = vmul.f32 %v1419, %v1478
        %v1535 = vmul.f32 %v1426, %v1478
        %v1536 = vmul.f32 %v1433, %v1478
        %v1537 = vmul.f32 %v1440, %v1478
        %v1538 = vmul.f32 %v1447, %v1478
        %v1539 = vmul.f32 %v1454, %v1478
        %v1540 = vmul.f32 %v1461, %v1478
        %v1541 = vmul.f32 %v1468, %v1478
        %v1542 = vmul.f32 %v1477, %v1478
        %v1543 = vld [vmem:[#allocation8] sm:$0xff]
        %v1544 = vld [vmem:[#allocation8 + $0x8] sm:$0xff]
        %v1545 = vld [vmem:[#allocation8 + $0x10] sm:$0xff]
        %v1546 = vld [vmem:[#allocation8 + $0x18] sm:$0xff]
        %v1547 = vld [vmem:[#allocation8 + $0x20] sm:$0xff]
        %v1548 = vld [vmem:[#allocation8 + $0x28] sm:$0xff]
        %v1549 = vld [vmem:[#allocation8 + $0x30] sm:$0xff]
        %v1550 = vld [vmem:[#allocation8 + $0x38] sm:$0xff]
        %v1551 = vld [vmem:[#allocation8 + $0x40] sm:$0xff]
        %v1552 = vld [vmem:[#allocation8 + $0x48] sm:$0xff]
        %v1553 = vld [vmem:[#allocation8 + $0x50] sm:$0xff]
        %v1554 = vld [vmem:[#allocation8 + $0x58] sm:$0xff]
        %v1555 = vld [vmem:[#allocation8 + $0x60] sm:$0xff]
        %v1556 = vld [vmem:[#allocation8 + $0x68] sm:$0xff]
        %v1557 = vld [vmem:[#allocation8 + $0x70] sm:$0xff]
        %v1558 = vld [vmem:[#allocation8 + $0x78] sm:$0xff]
        %v1559 = vld [vmem:[#allocation8 + $0x80] sm:$0xff]
        %v1560 = vld [vmem:[#allocation8 + $0x88] sm:$0xff]
        %v1561 = vld [vmem:[#allocation8 + $0x90] sm:$0xff]
        %v1562 = vld [vmem:[#allocation8 + $0x98] sm:$0xff]
        %v1563 = vld [vmem:[#allocation8 + $0xa0] sm:$0xff]
        %v1564 = vld [vmem:[#allocation8 + $0xa8] sm:$0xff]
        %v1565 = vld [vmem:[#allocation8 + $0xb0] sm:$0xff]
        %v1566 = vld [vmem:[#allocation8 + $0xb8] sm:$0xff]
        %v1567 = vld [vmem:[#allocation8 + $0xc0] sm:$0xff]
        %v1568 = vld [vmem:[#allocation8 + $0xc8] sm:$0xff]
        %v1569 = vld [vmem:[#allocation8 + $0xd0] sm:$0xff]
        %v1570 = vld [vmem:[#allocation8 + $0xd8] sm:$0xff]
        %v1571 = vld [vmem:[#allocation8 + $0xe0] sm:$0xff]
        %v1572 = vld [vmem:[#allocation8 + $0xe8] sm:$0xff]
        %v1573 = vld [vmem:[#allocation8 + $0xf0] sm:$0xff]
        %v1574 = vld [vmem:[#allocation8 + $0xf8] sm:$0xff]
        %v1575 = vld [vmem:[#allocation8 + $0x100] sm:$0xff]
        %v1576 = vld [vmem:[#allocation8 + $0x108] sm:$0xff]
        %v1577 = vld [vmem:[#allocation8 + $0x110] sm:$0xff]
        %v1578 = vld [vmem:[#allocation8 + $0x118] sm:$0xff]
        %v1579 = vld [vmem:[#allocation8 + $0x120] sm:$0xff]
        %v1580 = vld [vmem:[#allocation8 + $0x128] sm:$0xff]
        %v1581 = vld [vmem:[#allocation8 + $0x130] sm:$0xff]
        %v1582 = vld [vmem:[#allocation8 + $0x138] sm:$0xff]
        %v1583 = vld [vmem:[#allocation8 + $0x140] sm:$0xff]
        %v1584 = vld [vmem:[#allocation8 + $0x148] sm:$0xff]
        %v1585 = vld [vmem:[#allocation8 + $0x150] sm:$0xff]
        %v1586 = vld [vmem:[#allocation8 + $0x158] sm:$0xff]
        %v1587 = vld [vmem:[#allocation8 + $0x160] sm:$0xff]
        %v1588 = vld [vmem:[#allocation8 + $0x168] sm:$0xff]
        %v1589 = vld [vmem:[#allocation8 + $0x170] sm:$0xff]
        %v1590 = vld [vmem:[#allocation8 + $0x178] sm:$0xff]
        %v1591 = vld [vmem:[#allocation8 + $0x180] sm:$0xff]
        %v1592 = vld [vmem:[#allocation8 + $0x188] sm:$0xff]
        %v1593 = vld [vmem:[#allocation8 + $0x190] sm:$0xff]
        %v1594 = vld [vmem:[#allocation8 + $0x198] sm:$0xff]
        %v1595 = vld [vmem:[#allocation8 + $0x1a0] sm:$0xff]
        %v1596 = vld [vmem:[#allocation8 + $0x1a8] sm:$0xff]
        %v1597 = vld [vmem:[#allocation8 + $0x1b0] sm:$0xff]
        %v1598 = vld [vmem:[#allocation8 + $0x1b8] sm:$0xff]
        %v1599 = vld [vmem:[#allocation8 + $0x1c0] sm:$0xff]
        %v1600 = vld [vmem:[#allocation8 + $0x1c8] sm:$0xff]
        %v1601 = vld [vmem:[#allocation8 + $0x1d0] sm:$0xff]
        %v1602 = vld [vmem:[#allocation8 + $0x1d8] sm:$0xff]
        %v1603 = vld [vmem:[#allocation8 + $0x1e0] sm:$0xff]
        %v1604 = vld [vmem:[#allocation8 + $0x1e8] sm:$0xff]
        %v1605 = vld [vmem:[#allocation8 + $0x1f0] sm:$0xff]
        %v1606 = vld [vmem:[#allocation8 + $0x1f8] sm:$0xff]
        %v1607 = vld [vmem:[#allocation8 + $0x200] sm:$0xff]
        %v1608 = vld [vmem:[#allocation8 + $0x208] sm:$0xff]
        %v1609 = vld [vmem:[#allocation8 + $0x210] sm:$0xff]
        %v1610 = vld [vmem:[#allocation8 + $0x218] sm:$0xff]
        %v1611 = vld [vmem:[#allocation8 + $0x220] sm:$0xff]
        %v1612 = vld [vmem:[#allocation8 + $0x228] sm:$0xff]
        %v1613 = vld [vmem:[#allocation8 + $0x230] sm:$0xff]
        %v1614 = vld [vmem:[#allocation8 + $0x238] sm:$0xff]
        %v1615 = vld [vmem:[#allocation8 + $0x240] sm:$0xff]
        %v1616 = vld [vmem:[#allocation8 + $0x248] sm:$0xff]
        %v1617 = vld [vmem:[#allocation8 + $0x250] sm:$0xff]
        %v1618 = vld [vmem:[#allocation8 + $0x258] sm:$0xff]
        %v1619 = vld [vmem:[#allocation8 + $0x260] sm:$0xff]
        %v1620 = vld [vmem:[#allocation8 + $0x268] sm:$0xff]
        %v1621 = vld [vmem:[#allocation8 + $0x270] sm:$0xff]
        %v1622 = vld [vmem:[#allocation8 + $0x278] sm:$0xff]
        %v1623 = vld [vmem:[#allocation8 + $0x280] sm:$0xff]
        %v1624 = vld [vmem:[#allocation8 + $0x288] sm:$0xff]
        %v1625 = vld [vmem:[#allocation8 + $0x290] sm:$0xff]
        %v1626 = vld [vmem:[#allocation8 + $0x298] sm:$0xff]
        %v1627 = vld [vmem:[#allocation8 + $0x2a0] sm:$0xff]
        %v1628 = vld [vmem:[#allocation8 + $0x2a8] sm:$0xff]
        %v1629 = vld [vmem:[#allocation8 + $0x2b0] sm:$0xff]
        %v1630 = vld [vmem:[#allocation8 + $0x2b8] sm:$0xff]
        %v1631 = vld [vmem:[#allocation8 + $0x2c0] sm:$0xff]
        %v1632 = vld [vmem:[#allocation8 + $0x2c8] sm:$0xff]
        %v1633 = vld [vmem:[#allocation8 + $0x2d0] sm:$0xff]
        %v1634 = vld [vmem:[#allocation8 + $0x2d8] sm:$0xff]
        %v1635 = vld [vmem:[#allocation8 + $0x2e0] sm:$0xff]
        %v1636 = vld [vmem:[#allocation8 + $0x2e8] sm:$0xff]
        %v1637 = vld [vmem:[#allocation8 + $0x2f0] sm:$0xff]
        %v1638 = vld [vmem:[#allocation8 + $0x2f8] sm:$0xff]
        %v1639 = vld [vmem:[#allocation8 + $0x300] sm:$0xff]
        %v1640 = vld [vmem:[#allocation8 + $0x308] sm:$0xff]
        %v1641 = vld [vmem:[#allocation8 + $0x310] sm:$0xff]
        %v1642 = vld [vmem:[#allocation8 + $0x318] sm:$0xff]
        %v1643 = vld [vmem:[#allocation8 + $0x320] sm:$0xff]
        %v1644 = vld [vmem:[#allocation8 + $0x328] sm:$0xff]
        %v1645 = vld [vmem:[#allocation8 + $0x330] sm:$0xff]
        %v1646 = vld [vmem:[#allocation8 + $0x338] sm:$0xff]
        %v1647 = vld [vmem:[#allocation8 + $0x340] sm:$0xff]
        %v1648 = vld [vmem:[#allocation8 + $0x348] sm:$0xff]
        %v1649 = vld [vmem:[#allocation8 + $0x350] sm:$0xff]
        %v1650 = vld [vmem:[#allocation8 + $0x358] sm:$0xff]
        %v1651 = vld [vmem:[#allocation8 + $0x360] sm:$0xff]
        %v1652 = vld [vmem:[#allocation8 + $0x368] sm:$0xff]
        %v1653 = vld [vmem:[#allocation8 + $0x370] sm:$0xff]
        %v1654 = vld [vmem:[#allocation8 + $0x378] sm:$0xff]
        %v1655 = vld [vmem:[#allocation8 + $0x380] sm:$0xff]
        %v1656 = vld [vmem:[#allocation8 + $0x388] sm:$0xff]
        %v1657 = vld [vmem:[#allocation8 + $0x390] sm:$0xff]
        %v1658 = vld [vmem:[#allocation8 + $0x398] sm:$0xff]
        %v1659 = vld [vmem:[#allocation8 + $0x3a0] sm:$0xff]
        %v1660 = vld [vmem:[#allocation8 + $0x3a8] sm:$0xff]
        %v1661 = vld [vmem:[#allocation8 + $0x3b0] sm:$0xff]
        %v1662 = vld [vmem:[#allocation8 + $0x3b8] sm:$0xff]
        %v1663 = vld [vmem:[#allocation8 + $0x3c0] sm:$0xff]
        %v1664 = vld [vmem:[#allocation8 + $0x3c8] sm:$0xff]
        %v1665 = vld [vmem:[#allocation8 + $0x3d0] sm:$0xff]
        %v1666 = vld [vmem:[#allocation8 + $0x3d8] sm:$0xff]
        %v1667 = vld [vmem:[#allocation8 + $0x3e0] sm:$0xff]
        %v1668 = vld [vmem:[%s5] sm:$0x1]
        %v1670 = vlaneseq
        %v1671 = vshrl.u32 %v1670, 7
        %v1672 = vsub.s32 0, %v1671
        %v1673 = vrot.slane %v1668, %v1672
        %vm1739 = vcmask 1041409
        %v1740 = vsel %vm1739, %v1487, %v1479
        %vm1741 = vcmask 1042434
        %v1742 = vsel %vm1741, %v1495, %v1740
        %vm1743 = vcmask 1043459
        %v1744 = vsel %vm1743, %v1503, %v1742
        %vm1745 = vcmask 1044484
        %v1746 = vsel %vm1745, %v1511, %v1744
        %vm1747 = vcmask 1045509
        %v1748 = vsel %vm1747, %v1519, %v1746
        %vm1749 = vcmask 1046534
        %v1750 = vsel %vm1749, %v1527, %v1748
        %vm1751 = vcmask 1047559
        %v1752 = vsel %vm1751, %v1535, %v1750
        %v1753 = vsel %vm1739, %v1488, %v1480
        %v1754 = vsel %vm1741, %v1496, %v1753
        %v1755 = vsel %vm1743, %v1504, %v1754
        %v1756 = vsel %vm1745, %v1512, %v1755
        %v1757 = vsel %vm1747, %v1520, %v1756
        %v1758 = vsel %vm1749, %v1528, %v1757
        %v1759 = vsel %vm1751, %v1536, %v1758
        %v1760 = vsel %vm1739, %v1489, %v1481
        %v1761 = vsel %vm1741, %v1497, %v1760
        %v1762 = vsel %vm1743, %v1505, %v1761
        %v1763 = vsel %vm1745, %v1513, %v1762
        %v1764 = vsel %vm1747, %v1521, %v1763
        %v1765 = vsel %vm1749, %v1529, %v1764
        %v1766 = vsel %vm1751, %v1537, %v1765
        %v1767 = vsel %vm1739, %v1490, %v1482
        %v1768 = vsel %vm1741, %v1498, %v1767
        %v1769 = vsel %vm1743, %v1506, %v1768
        %v1770 = vsel %vm1745, %v1514, %v1769
        %v1771 = vsel %vm1747, %v1522, %v1770
        %v1772 = vsel %vm1749, %v1530, %v1771
        %v1773 = vsel %vm1751, %v1538, %v1772
        %v1774 = vsel %vm1739, %v1491, %v1483
        %v1775 = vsel %vm1741, %v1499, %v1774
        %v1776 = vsel %vm1743, %v1507, %v1775
        %v1777 = vsel %vm1745, %v1515, %v1776
        %v1778 = vsel %vm1747, %v1523, %v1777
        %v1779 = vsel %vm1749, %v1531, %v1778
        %v1780 = vsel %vm1751, %v1539, %v1779
        %v1781 = vsel %vm1739, %v1492, %v1484
        %v1782 = vsel %vm1741, %v1500, %v1781
        %v1783 = vsel %vm1743, %v1508, %v1782
        %v1784 = vsel %vm1745, %v1516, %v1783
        %v1785 = vsel %vm1747, %v1524, %v1784
        %v1786 = vsel %vm1749, %v1532, %v1785
        %v1787 = vsel %vm1751, %v1540, %v1786
        %v1788 = vsel %vm1739, %v1493, %v1485
        %v1789 = vsel %vm1741, %v1501, %v1788
        %v1790 = vsel %vm1743, %v1509, %v1789
        %v1791 = vsel %vm1745, %v1517, %v1790
        %v1792 = vsel %vm1747, %v1525, %v1791
        %v1793 = vsel %vm1749, %v1533, %v1792
        %v1794 = vsel %vm1751, %v1541, %v1793
        %v1795 = vsel %vm1739, %v1494, %v1486
        %v1796 = vsel %vm1741, %v1502, %v1795
        %v1797 = vsel %vm1743, %v1510, %v1796
        %v1798 = vsel %vm1745, %v1518, %v1797
        %v1799 = vsel %vm1747, %v1526, %v1798
        %v1800 = vsel %vm1749, %v1534, %v1799
        %v1801 = vsel %vm1751, %v1542, %v1800
        %v1809 = vsel %vm1062, %v1801, 0
        %1811 = vmatprep.subr.mxu0 0.0
        %1812 = vmatpush1.msra.mxu0 %v1543
        %1813 = vmatprep.subr.mxu0 0.0
        %1814 = vmatpush1.msra.mxu0 %v1544
        %1815 = vmatprep.subr.mxu0 0.0
        %1816 = vmatpush1.msra.mxu0 %v1545
        %1817 = vmatprep.subr.mxu0 0.0
        %1818 = vmatpush1.msra.mxu0 %v1546
        %1819 = vmatprep.subr.mxu0 0.0
        %1820 = vmatpush1.msra.mxu0 %v1547
        %1821 = vmatprep.subr.mxu0 0.0
        %1822 = vmatpush1.msra.mxu0 %v1548
        %1823 = vmatprep.subr.mxu0 0.0
        %1824 = vmatpush1.msra.mxu0 %v1549
        %1825 = vmatprep.subr.mxu0 0.0
        %1826 = vmatpush1.msra.mxu0 %v1550
        %1827 = vmatprep.subr.mxu0 0.0
        %1828 = vmatpush1.msra.mxu0 %v1551
        %1829 = vmatprep.subr.mxu0 0.0
        %1830 = vmatpush1.msra.mxu0 %v1552
        %1831 = vmatprep.subr.mxu0 0.0
        %1832 = vmatpush1.msra.mxu0 %v1553
        %1833 = vmatprep.subr.mxu0 0.0
        %1834 = vmatpush1.msra.mxu0 %v1554
        %1835 = vmatprep.subr.mxu0 0.0
        %1836 = vmatpush1.msra.mxu0 %v1555
        %1837 = vmatprep.subr.mxu0 0.0
        %1838 = vmatpush1.msra.mxu0 %v1556
        %1839 = vmatprep.subr.mxu0 0.0
        %1840 = vmatpush1.msra.mxu0 %v1557
        %1841 = vmatprep.subr.mxu0 0.0
        %1842 = vmatpush1.msra.mxu0 %v1558
        %1843 = vmatprep.subr.mxu0 0.0
        %1844 = vmatpush1.msra.mxu0 %v1559
        %1845 = vmatprep.subr.mxu0 0.0
        %1846 = vmatpush1.msra.mxu0 %v1560
        %1847 = vmatprep.subr.mxu0 0.0
        %1848 = vmatpush1.msra.mxu0 %v1561
        %1849 = vmatprep.subr.mxu0 0.0
        %1850 = vmatpush1.msra.mxu0 %v1562
        %1851 = vmatprep.subr.mxu0 0.0
        %1852 = vmatpush1.msra.mxu0 %v1563
        %1853 = vmatprep.subr.mxu0 0.0
        %1854 = vmatpush1.msra.mxu0 %v1564
        %1855 = vmatprep.subr.mxu0 0.0
        %1856 = vmatpush1.msra.mxu0 %v1565
        %1857 = vmatprep.subr.mxu0 0.0
        %1858 = vmatpush1.msra.mxu0 %v1566
        %1859 = vmatprep.subr.mxu0 0.0
        %1860 = vmatpush1.msra.mxu0 %v1567
        %1861 = vmatprep.subr.mxu0 0.0
        %1862 = vmatpush1.msra.mxu0 %v1568
        %1863 = vmatprep.subr.mxu0 0.0
        %1864 = vmatpush1.msra.mxu0 %v1569
        %1865 = vmatprep.subr.mxu0 0.0
        %1866 = vmatpush1.msra.mxu0 %v1570
        %1867 = vmatprep.subr.mxu0 0.0
        %1868 = vmatpush1.msra.mxu0 %v1571
        %1869 = vmatprep.subr.mxu0 0.0
        %1870 = vmatpush1.msra.mxu0 %v1572
        %1871 = vmatprep.subr.mxu0 0.0
        %1872 = vmatpush1.msra.mxu0 %v1573
        %1873 = vmatprep.subr.mxu0 0.0
        %1874 = vmatpush1.msra.mxu0 %v1574
        %1875 = vmatprep.mubr.f32.mxu0 %v1759
        %1876 = vmatmul.mubr.f32.gmra.mrb[0].mxu0 %v1752
        %v1877 = vpop.f32.mrb[0].mxu0
        %v1878 = vadd.f32 %v1673, %v1877
        %v1879 = vpop.f32.mrb[0].mxu0
        %1880 = vdwg.mxu0
        %1881 = vmatprep.subr.mxu0 0.0
        %1882 = vmatpush1.msra.mxu0 %v1575
        %1883 = vmatprep.subr.mxu0 0.0
        %1884 = vmatpush1.msra.mxu0 %v1576
        %1885 = vmatprep.subr.mxu0 0.0
        %1886 = vmatpush1.msra.mxu0 %v1577
        %1887 = vmatprep.subr.mxu0 0.0
        %1888 = vmatpush1.msra.mxu0 %v1578
        %1889 = vmatprep.subr.mxu0 0.0
        %1890 = vmatpush1.msra.mxu0 %v1579
        %1891 = vmatprep.subr.mxu0 0.0
        %1892 = vmatpush1.msra.mxu0 %v1580
        %1893 = vmatprep.subr.mxu0 0.0
        %1894 = vmatpush1.msra.mxu0 %v1581
        %1895 = vmatprep.subr.mxu0 0.0
        %1896 = vmatpush1.msra.mxu0 %v1582
        %1897 = vmatprep.subr.mxu0 0.0
        %1898 = vmatpush1.msra.mxu0 %v1583
        %1899 = vmatprep.subr.mxu0 0.0
        %1900 = vmatpush1.msra.mxu0 %v1584
        %1901 = vmatprep.subr.mxu0 0.0
        %1902 = vmatpush1.msra.mxu0 %v1585
        %1903 = vmatprep.subr.mxu0 0.0
        %1904 = vmatpush1.msra.mxu0 %v1586
        %1905 = vmatprep.subr.mxu0 0.0
        %1906 = vmatpush1.msra.mxu0 %v1587
        %1907 = vmatprep.subr.mxu0 0.0
        %1908 = vmatpush1.msra.mxu0 %v1588
        %1909 = vmatprep.subr.mxu0 0.0
        %1910 = vmatpush1.msra.mxu0 %v1589
        %1911 = vmatprep.subr.mxu0 0.0
        %1912 = vmatpush1.msra.mxu0 %v1590
        %1913 = vmatprep.subr.mxu0 0.0
        %1914 = vmatpush1.msra.mxu0 %v1591
        %1915 = vmatprep.subr.mxu0 0.0
        %1916 = vmatpush1.msra.mxu0 %v1592
        %1917 = vmatprep.subr.mxu0 0.0
        %1918 = vmatpush1.msra.mxu0 %v1593
        %1919 = vmatprep.subr.mxu0 0.0
        %1920 = vmatpush1.msra.mxu0 %v1594
        %1921 = vmatprep.subr.mxu0 0.0
        %1922 = vmatpush1.msra.mxu0 %v1595
        %1923 = vmatprep.subr.mxu0 0.0
        %1924 = vmatpush1.msra.mxu0 %v1596
        %1925 = vmatprep.subr.mxu0 0.0
        %1926 = vmatpush1.msra.mxu0 %v1597
        %1927 = vmatprep.subr.mxu0 0.0
        %1928 = vmatpush1.msra.mxu0 %v1598
        %1929 = vmatprep.subr.mxu0 0.0
        %1930 = vmatpush1.msra.mxu0 %v1599
        %1931 = vmatprep.subr.mxu0 0.0
        %1932 = vmatpush1.msra.mxu0 %v1600
        %1933 = vmatprep.subr.mxu0 0.0
        %1934 = vmatpush1.msra.mxu0 %v1601
        %1935 = vmatprep.subr.mxu0 0.0
        %1936 = vmatpush1.msra.mxu0 %v1602
        %1937 = vmatprep.subr.mxu0 0.0
        %1938 = vmatpush1.msra.mxu0 %v1603
        %1939 = vmatprep.subr.mxu0 0.0
        %1940 = vmatpush1.msra.mxu0 %v1604
        %1941 = vmatprep.subr.mxu0 0.0
        %1942 = vmatpush1.msra.mxu0 %v1605
        %1943 = vmatprep.subr.mxu0 0.0
        %1944 = vmatpush1.msra.mxu0 %v1606
        %1945 = vmatprep.mubr.f32.mxu0 %v1773
        %1946 = vmatmul.mubr.f32.gmra.mrb[0].mxu0 %v1766
        %v1947 = vpop.f32.mrb[0].mxu0
        %v1948 = vadd.f32 %v1878, %v1947
        %v1949 = vpop.f32.mrb[0].mxu0
        %1950 = vdwg.mxu0
        %1951 = vmatprep.subr.mxu0 0.0
        %1952 = vmatpush1.msra.mxu0 %v1607
        %1953 = vmatprep.subr.mxu0 0.0
        %1954 = vmatpush1.msra.mxu0 %v1608
        %1955 = vmatprep.subr.mxu0 0.0
        %1956 = vmatpush1.msra.mxu0 %v1609
        %1957 = vmatprep.subr.mxu0 0.0
        %1958 = vmatpush1.msra.mxu0 %v1610
        %1959 = vmatprep.subr.mxu0 0.0
        %1960 = vmatpush1.msra.mxu0 %v1611
        %1961 = vmatprep.subr.mxu0 0.0
        %1962 = vmatpush1.msra.mxu0 %v1612
        %1963 = vmatprep.subr.mxu0 0.0
        %1964 = vmatpush1.msra.mxu0 %v1613
        %1965 = vmatprep.subr.mxu0 0.0
        %1966 = vmatpush1.msra.mxu0 %v1614
        %1967 = vmatprep.subr.mxu0 0.0
        %1968 = vmatpush1.msra.mxu0 %v1615
        %1969 = vmatprep.subr.mxu0 0.0
        %1970 = vmatpush1.msra.mxu0 %v1616
        %1971 = vmatprep.subr.mxu0 0.0
        %1972 = vmatpush1.msra.mxu0 %v1617
        %1973 = vmatprep.subr.mxu0 0.0
        %1974 = vmatpush1.msra.mxu0 %v1618
        %1975 = vmatprep.subr.mxu0 0.0
        %1976 = vmatpush1.msra.mxu0 %v1619
        %1977 = vmatprep.subr.mxu0 0.0
        %1978 = vmatpush1.msra.mxu0 %v1620
        %1979 = vmatprep.subr.mxu0 0.0
        %1980 = vmatpush1.msra.mxu0 %v1621
        %1981 = vmatprep.subr.mxu0 0.0
        %1982 = vmatpush1.msra.mxu0 %v1622
        %1983 = vmatprep.subr.mxu0 0.0
        %1984 = vmatpush1.msra.mxu0 %v1623
        %1985 = vmatprep.subr.mxu0 0.0
        %1986 = vmatpush1.msra.mxu0 %v1624
        %1987 = vmatprep.subr.mxu0 0.0
        %1988 = vmatpush1.msra.mxu0 %v1625
        %1989 = vmatprep.subr.mxu0 0.0
        %1990 = vmatpush1.msra.mxu0 %v1626
        %1991 = vmatprep.subr.mxu0 0.0
        %1992 = vmatpush1.msra.mxu0 %v1627
        %1993 = vmatprep.subr.mxu0 0.0
        %1994 = vmatpush1.msra.mxu0 %v1628
        %1995 = vmatprep.subr.mxu0 0.0
        %1996 = vmatpush1.msra.mxu0 %v1629
        %1997 = vmatprep.subr.mxu0 0.0
        %1998 = vmatpush1.msra.mxu0 %v1630
        %1999 = vmatprep.subr.mxu0 0.0
        %2000 = vmatpush1.msra.mxu0 %v1631
        %2001 = vmatprep.subr.mxu0 0.0
        %2002 = vmatpush1.msra.mxu0 %v1632
        %2003 = vmatprep.subr.mxu0 0.0
        %2004 = vmatpush1.msra.mxu0 %v1633
        %2005 = vmatprep.subr.mxu0 0.0
        %2006 = vmatpush1.msra.mxu0 %v1634
        %2007 = vmatprep.subr.mxu0 0.0
        %2008 = vmatpush1.msra.mxu0 %v1635
        %2009 = vmatprep.subr.mxu0 0.0
        %2010 = vmatpush1.msra.mxu0 %v1636
        %2011 = vmatprep.subr.mxu0 0.0
        %2012 = vmatpush1.msra.mxu0 %v1637
        %2013 = vmatprep.subr.mxu0 0.0
        %2014 = vmatpush1.msra.mxu0 %v1638
        %2015 = vmatprep.mubr.f32.mxu0 %v1787
        %2016 = vmatmul.mubr.f32.gmra.mrb[0].mxu0 %v1780
        %v2017 = vpop.f32.mrb[0].mxu0
        %v2018 = vadd.f32 %v1948, %v2017
        %v2019 = vpop.f32.mrb[0].mxu0
        %2020 = vdwg.mxu0
        %2021 = vmatprep.subr.mxu0 0.0
        %2022 = vmatpush1.msra.mxu0 %v1639
        %2023 = vmatprep.subr.mxu0 0.0
        %2024 = vmatpush1.msra.mxu0 %v1640
        %2025 = vmatprep.subr.mxu0 0.0
        %2026 = vmatpush1.msra.mxu0 %v1641
        %2027 = vmatprep.subr.mxu0 0.0
        %2028 = vmatpush1.msra.mxu0 %v1642
        %2029 = vmatprep.subr.mxu0 0.0
        %2030 = vmatpush1.msra.mxu0 %v1643
        %2031 = vmatprep.subr.mxu0 0.0
        %2032 = vmatpush1.msra.mxu0 %v1644
        %2033 = vmatprep.subr.mxu0 0.0
        %2034 = vmatpush1.msra.mxu0 %v1645
        %2035 = vmatprep.subr.mxu0 0.0
        %2036 = vmatpush1.msra.mxu0 %v1646
        %2037 = vmatprep.subr.mxu0 0.0
        %2038 = vmatpush1.msra.mxu0 %v1647
        %2039 = vmatprep.subr.mxu0 0.0
        %2040 = vmatpush1.msra.mxu0 %v1648
        %2041 = vmatprep.subr.mxu0 0.0
        %2042 = vmatpush1.msra.mxu0 %v1649
        %2043 = vmatprep.subr.mxu0 0.0
        %2044 = vmatpush1.msra.mxu0 %v1650
        %2045 = vmatprep.subr.mxu0 0.0
        %2046 = vmatpush1.msra.mxu0 %v1651
        %2047 = vmatprep.subr.mxu0 0.0
        %2048 = vmatpush1.msra.mxu0 %v1652
        %2049 = vmatprep.subr.mxu0 0.0
        %2050 = vmatpush1.msra.mxu0 %v1653
        %2051 = vmatprep.subr.mxu0 0.0
        %2052 = vmatpush1.msra.mxu0 %v1654
        %2053 = vmatprep.subr.mxu0 0.0
        %2054 = vmatpush1.msra.mxu0 %v1655
        %2055 = vmatprep.subr.mxu0 0.0
        %2056 = vmatpush1.msra.mxu0 %v1656
        %2057 = vmatprep.subr.mxu0 0.0
        %2058 = vmatpush1.msra.mxu0 %v1657
        %2059 = vmatprep.subr.mxu0 0.0
        %2060 = vmatpush1.msra.mxu0 %v1658
        %2061 = vmatprep.subr.mxu0 0.0
        %2062 = vmatpush1.msra.mxu0 %v1659
        %2063 = vmatprep.subr.mxu0 0.0
        %2064 = vmatpush1.msra.mxu0 %v1660
        %2065 = vmatprep.subr.mxu0 0.0
        %2066 = vmatpush1.msra.mxu0 %v1661
        %2067 = vmatprep.subr.mxu0 0.0
        %2068 = vmatpush1.msra.mxu0 %v1662
        %2069 = vmatprep.subr.mxu0 0.0
        %2070 = vmatpush1.msra.mxu0 %v1663
        %2071 = vmatprep.subr.mxu0 0.0
        %2072 = vmatpush1.msra.mxu0 %v1664
        %2073 = vmatprep.subr.mxu0 0.0
        %2074 = vmatpush1.msra.mxu0 %v1665
        %2075 = vmatprep.subr.mxu0 0.0
        %2076 = vmatpush1.msra.mxu0 %v1666
        %2077 = vmatprep.subr.mxu0 0.0
        %2078 = vmatpush1.msra.mxu0 %v1667
        %2079 = vmatprep.subr.mxu0 0.0
        %2080 = vmatpush1.msra.mxu0 0.0
        %2081 = vmatprep.subr.mxu0 0.0
        %2082 = vmatpush1.msra.mxu0 0.0
        %2083 = vmatprep.subr.mxu0 0.0
        %2084 = vmatpush1.msra.mxu0 0.0
        %2085 = vmatprep.mubr.f32.mxu0 %v1809
        %2086 = vmatmul.mubr.f32.gmra.mrb[0].mxu0 %v1794
        %v2087 = vpop.f32.mrb[0].mxu0
        %v2088 = vadd.f32 %v2018, %v2087
        %v2089 = vpop.f32.mrb[0].mxu0
        %2090 = vdwg.mxu0
        %v2091 = vmax.f32 %v2088, 0.0
        %v2092 = vld [vmem:[#allocation10] sm:$0xff]
        %v2093 = vld [vmem:[#allocation10 + $0x8] sm:$0xff]
        %v2094 = vld [vmem:[#allocation10 + $0x10] sm:$0xff]
        %v2095 = vld [vmem:[#allocation10 + $0x18] sm:$0xff]
        %v2096 = vld [vmem:[#allocation10 + $0x20] sm:$0xff]
        %v2097 = vld [vmem:[#allocation10 + $0x28] sm:$0xff]
        %v2098 = vld [vmem:[#allocation10 + $0x30] sm:$0xff]
        %v2099 = vld [vmem:[#allocation10 + $0x38] sm:$0xff]
        %v2100 = vld [vmem:[#allocation10 + $0x40] sm:$0xff]
        %v2101 = vld [vmem:[#allocation10 + $0x48] sm:$0xff]
        %v2102 = vld [vmem:[#allocation10 + $0x50] sm:$0xff]
        %v2103 = vld [vmem:[#allocation10 + $0x58] sm:$0xff]
        %v2104 = vld [vmem:[#allocation10 + $0x60] sm:$0xff]
        %v2105 = vld [vmem:[#allocation10 + $0x68] sm:$0xff]
        %v2106 = vld [vmem:[#allocation10 + $0x70] sm:$0xff]
        %v2107 = vld [vmem:[#allocation10 + $0x78] sm:$0xff]
        %v2108 = vld [vmem:[%s7] sm:$0x1]
        %v2110 = vlaneseq
        %v2111 = vshrl.u32 %v2110, 7
        %v2112 = vsub.s32 0, %v2111
        %v2113 = vrot.slane %v2108, %v2112
        %2115 = vmatprep.subr.mxu0 0.0
        %2116 = vmatpush1.msra.mxu0 %v2092
        %2117 = vmatprep.subr.mxu0 0.0
        %2118 = vmatpush1.msra.mxu0 %v2093
        %2119 = vmatprep.subr.mxu0 0.0
        %2120 = vmatpush1.msra.mxu0 %v2094
        %2121 = vmatprep.subr.mxu0 0.0
        %2122 = vmatpush1.msra.mxu0 %v2095
        %2123 = vmatprep.subr.mxu0 0.0
        %2124 = vmatpush1.msra.mxu0 %v2096
        %2125 = vmatprep.subr.mxu0 0.0
        %2126 = vmatpush1.msra.mxu0 %v2097
        %2127 = vmatprep.subr.mxu0 0.0
        %2128 = vmatpush1.msra.mxu0 %v2098
        %2129 = vmatprep.subr.mxu0 0.0
        %2130 = vmatpush1.msra.mxu0 %v2099
        %2131 = vmatprep.subr.mxu0 0.0
        %2132 = vmatpush1.msra.mxu0 %v2100
        %2133 = vmatprep.subr.mxu0 0.0
        %2134 = vmatpush1.msra.mxu0 %v2101
        %2135 = vmatprep.subr.mxu0 0.0
        %2136 = vmatpush1.msra.mxu0 %v2102
        %2137 = vmatprep.subr.mxu0 0.0
        %2138 = vmatpush1.msra.mxu0 %v2103
        %2139 = vmatprep.subr.mxu0 0.0
        %2140 = vmatpush1.msra.mxu0 %v2104
        %2141 = vmatprep.subr.mxu0 0.0
        %2142 = vmatpush1.msra.mxu0 %v2105
        %2143 = vmatprep.subr.mxu0 0.0
        %2144 = vmatpush1.msra.mxu0 %v2106
        %2145 = vmatprep.subr.mxu0 0.0
        %2146 = vmatpush1.msra.mxu0 %v2107
        %2147 = vmatprep.subr.mxu0 0.0
        %2148 = vmatpush1.msra.mxu0 0.0
        %2149 = vmatprep.subr.mxu0 0.0
        %2150 = vmatpush1.msra.mxu0 0.0
        %2151 = vmatprep.subr.mxu0 0.0
        %2152 = vmatpush1.msra.mxu0 0.0
        %2153 = vmatprep.subr.mxu0 0.0
        %2154 = vmatpush1.msra.mxu0 0.0
        %2155 = vmatprep.subr.mxu0 0.0
        %2156 = vmatpush1.msra.mxu0 0.0
        %2157 = vmatprep.subr.mxu0 0.0
        %2158 = vmatpush1.msra.mxu0 0.0
        %2159 = vmatprep.subr.mxu0 0.0
        %2160 = vmatpush1.msra.mxu0 0.0
        %2161 = vmatprep.subr.mxu0 0.0
        %2162 = vmatpush1.msra.mxu0 0.0
        %2163 = vmatprep.subr.mxu0 0.0
        %2164 = vmatpush1.msra.mxu0 0.0
        %2165 = vmatprep.subr.mxu0 0.0
        %2166 = vmatpush1.msra.mxu0 0.0
        %2167 = vmatprep.subr.mxu0 0.0
        %2168 = vmatpush1.msra.mxu0 0.0
        %2169 = vmatprep.subr.mxu0 0.0
        %2170 = vmatpush1.msra.mxu0 0.0
        %2171 = vmatprep.subr.mxu0 0.0
        %2172 = vmatpush1.msra.mxu0 0.0
        %2173 = vmatprep.subr.mxu0 0.0
        %2174 = vmatpush1.msra.mxu0 0.0
        %2175 = vmatprep.subr.mxu0 0.0
        %2176 = vmatpush1.msra.mxu0 0.0
        %2177 = vmatprep.subr.mxu0 0.0
        %2178 = vmatpush1.msra.mxu0 0.0
        %2179 = vmatprep.mubr.f32.mxu0 0.0
        %2180 = vmatmul.mubr.f32.gmra.mrb[0].mxu0 %v2091
        %v2181 = vpop.f32.mrb[0].mxu0
        %v2182 = vadd.f32 %v2113, %v2181
        %v2183 = vpop.f32.mrb[0].mxu0
        %2184 = vdwg.mxu0
        %v2185 = vmax.f32 %v2182, 0.0
        %2186 = vst [vmem:[%s405] sm:$0xff] %v2185
        %s2187 = sand.u32 %s215, 1
        %s2188 = scalar_lea.sflag [#allocation4], %s2187
        %s2189 = sand.u32 %s215, 1
        %s2190 = smul.addr %s2189, 8
        %s2191 = scalar_lea.vmem [#allocation11], %s2190
        // Predicated region
        $region73: #{tpu_custom_call.1} parent=51 // pred_check
          %p2192 = pneg %p225
        $region74: #{tpu_custom_call.1} parent=51 // pred_check_branch
          %2194 = sbr.rel (%p2192) target = $region76
        $region75: #{tpu_custom_call.1} parent=51 // pred_region
          %s2196 = ssub.s32 128, 128
          %2197 = vsyncadd %s2188, %s2196
          %s2198 = smul.addr %s29, 128
          %s2199 = scalar_lea.hbm %s8, %s2198
          %s2201 = sshll.u32 %s2191, 4
          %s2202 = int_to_ptr.vmem [resolvable:$true] %s2201
          %2204 = dma.vmem_to_hbm [thread:$0]  %s2202, 128, %s2199, %s2188
        $region76: #{tpu_custom_call.1} parent=51 // pred_fallthru
          _
      $region52: #{tpu_custom_call.1} parent=5 // pred_fallthru
        _
      %p2205 = scmp.le.s32.totalorder 2, %s24
      // Predicated region
      $region77: #{tpu_custom_call.1} parent=5 // pred_check
        %p2206 = pneg %p2205
      $region78: #{tpu_custom_call.1} parent=5 // pred_check_branch
        %2208 = sbr.rel (%p2206) target = $region80
      $region79: #{tpu_custom_call.1} parent=5 // pred_region
        %s2209 = ssub.s32 %s24, 2
        // Predicated region
        $region81: #{tpu_custom_call.1} parent=79 // pred_check
          %p2210 = pneg %p231
        $region82: #{tpu_custom_call.1} parent=79 // pred_check_branch
          %2212 = sbr.rel (%p2210) target = $region84
        $region83: #{tpu_custom_call.1} parent=79 // pred_region
          %s2213 = sand.u32 %s216, 1
          %s2214 = scalar_lea.sflag [#allocation4], %s2213
          %s2215 = sand.u32 %s216, 1
          %s2216 = smul.addr %s2215, 8
          %s2217 = scalar_lea.vmem [#allocation11], %s2216
          %2218 = dma.done %s2214, 128
        $region84: #{tpu_custom_call.1} parent=79 // pred_fallthru
          _
      $region80: #{tpu_custom_call.1} parent=5 // pred_fallthru
        _
    $region6: #{tpu_custom_call.1} parent=1 // loop_footer
      %s28 = sadd.s32 1, %s24
    $region7: #{tpu_custom_call.1} parent=1 // loop_footer_branch
      %23 = sbr.rel target = $region3
    $region8: #{tpu_custom_call.1} parent=1 // loop_exit
      _
    %2219 = vsyncpa [#allocation3], 1
    %s2220 = scalar_lea.sflag [#allocation3], 1
    %2221 = vsyncpa %s2220, 1
    %2222 = vsyncpa [#allocation6], 1
    %s2223 = scalar_lea.sflag [#allocation6], 1
    %2224 = vsyncpa %s2223, 1
    %2225 = vsyncpa [#allocation9], 1
    %2226 = vsyncpa [#allocation4], 1
    %s2227 = scalar_lea.sflag [#allocation4], 1
    %2228 = vsyncpa %s2227, 1

</llo_original>
